<compile_context>
chip_gen: v6e
topology: v6e:2x2x1
jax: 0.10.0
libtpu: 0.0.40
codegen_flags: <defaults>
</compile_context>

<pallas_src>
import jax
import jax.numpy as jnp
from jax.experimental import pallas as pl
from jax.experimental.pallas import tpu as pltpu


def _vmem_budget_bytes():
    """~75% of this generation's VMEM (v5e/v6e: 128 MiB, v7x: 64 MiB/TC)."""
    try:
        cap = pltpu.get_tpu_info().vmem_capacity_bytes
    except Exception:
        cap = 64 * 1024 * 1024          # conservative fallback (v7x per-TC)
    return int(cap * 3 // 4)


def _pick_d_tile(D, L, B_pad, budget_bytes):
    """Largest lane-aligned divisor of D whose double-buffered working set fits."""
    cands = sorted({t for t in range(128, D + 1, 128) if D % t == 0}, reverse=True)
    if not cands:
        return D                        # D not a multiple of 128: one full block
    fixed = B_pad * L * (4 + 4 + 4 + 2) + 2 * L * 4   # code, y, noise, y_bf16, b_enc
    for t in cands:
        per = 2 * (2 * t * L * 2        # w_enc + w_dec bf16 tiles (double-buffered)
                   + 2 * B_pad * t * 4  # x + rec f32 tiles
                   + t * 4)             # b_dec tile
        if fixed + per <= budget_bytes:
            return t
    return cands[-1]


# ---------------- fused encoder + channel-noise + decoder kernel ----------------
def generator_kernel(std_ref, x_ref, we_ref, be_ref, noise_ref, wd_ref, bd_ref,
                     code_ref, y_ref, rec_ref, y_bf16_ref):
    phase = pl.program_id(0)            # 0 = encoder (K-reduction), 1 = decoder
    d = pl.program_id(1)

    @pl.when(phase == 0)
    def _encoder():
        @pl.when(d == 0)
        def _():
            code_ref[...] = jnp.zeros_like(code_ref)

        # bf16 MXU matmul, f32 accumulation directly into the resident output.
        code_ref[...] += jnp.dot(x_ref[...].astype(jnp.bfloat16), we_ref[...],
                                 preferred_element_type=jnp.float32)

        @pl.when(d == pl.num_programs(1) - 1)
        def _():
            # Finalize: bias + relu + channel noise (all f32 on the VPU).
            code = jnp.maximum(code_ref[...] + be_ref[...], 0.0)
            y = code + noise_ref[...] * std_ref[0]
            code_ref[...] = code
            y_ref[...] = y
            y_bf16_ref[...] = y.astype(jnp.bfloat16)   # cast once for the decoder

    @pl.when(phase == 1)
    def _decoder():
        rec_ref[...] = (jnp.dot(y_bf16_ref[...], wd_ref[...],
                                preferred_element_type=jnp.float32)
                        + bd_ref[...])


def generator_forward(x_nchw, stddev, params, noise_key):
    """x_nchw: [B, C, H, W] float32. Returns (reconst_nchw, (y, code))."""
    B, C, H, W = x_nchw.shape
    D = C * H * W
    L = params["w_enc"].shape[1]

    # Pad batch to full sublanes (>=8) so stores are unmasked.
    B_pad = max(8, ((B + 7) // 8) * 8)
    x_flat = x_nchw.reshape(B, D)
    if B_pad != B:
        x_flat = jnp.pad(x_flat, ((0, B_pad - B), (0, 0)))

    budget = _vmem_budget_bytes()
    tD = _pick_d_tile(D, L, B_pad, budget)
    nD = D // tD
    last = nD - 1

    # Channel noise (matches torch.randn_like(code)); tiny (B_pad, L) array.
    noise = jax.random.normal(noise_key, (B_pad, L), jnp.float32)
    std_arr = jnp.asarray(stddev, jnp.float32).reshape(1)

    code, y, rec = pl.pallas_call(
        generator_kernel,
        out_shape=(jax.ShapeDtypeStruct((B_pad, L), jnp.float32),   # code
                   jax.ShapeDtypeStruct((B_pad, L), jnp.float32),   # y
                   jax.ShapeDtypeStruct((B_pad, D), jnp.float32)),  # reconst
        grid=(2, nD),
        in_specs=[
            pl.BlockSpec(memory_space=pltpu.MemorySpace.SMEM),                # stddev
            pl.BlockSpec((B_pad, tD), lambda p, d: (0, d + p * (last - d))),  # x (f32)
            pl.BlockSpec((tD, L),     lambda p, d: (d + p * (last - d), 0)),  # w_enc bf16
            pl.BlockSpec((1, L),      lambda p, d: (0, 0)),                   # b_enc f32
            pl.BlockSpec((B_pad, L),  lambda p, d: (0, 0)),                   # noise f32
            pl.BlockSpec((L, tD),     lambda p, d: (0, d * p)),               # w_dec bf16
            pl.BlockSpec((1, tD),     lambda p, d: (0, d * p)),               # b_dec f32
        ],
        out_specs=(pl.BlockSpec((B_pad, L),  lambda p, d: (0, 0)),
                   pl.BlockSpec((B_pad, L),  lambda p, d: (0, 0)),
                   pl.BlockSpec((B_pad, tD), lambda p, d: (0, d * p))),
        scratch_shapes=[pltpu.VMEM((B_pad, L), jnp.bfloat16)],                # y (bf16)
        compiler_params=pltpu.CompilerParams(
            dimension_semantics=("arbitrary", "arbitrary"),
            vmem_limit_bytes=budget),
    )(std_arr, x_flat, params["w_enc"], params["b_enc"], noise,
      params["w_dec"], params["b_dec"])

    reconst = rec[:B].reshape(B, C, H, W)
    return reconst, (y[:B], code[:B])


def init_params(key, in_features, latent):
    k1, k2, k3, k4 = jax.random.split(key, 4)
    w_enc = (jax.random.normal(k1, (in_features, latent), jnp.float32)
             / jnp.sqrt(jnp.float32(in_features))).astype(jnp.bfloat16)
    w_dec = (jax.random.normal(k2, (latent, in_features), jnp.float32)
             / jnp.sqrt(jnp.float32(latent))).astype(jnp.bfloat16)
    return {
        "w_enc": w_enc,
        "b_enc": 0.01 * jax.random.normal(k3, (1, latent), jnp.float32),
        "w_dec": w_dec,
        "b_dec": 0.01 * jax.random.normal(k4, (1, in_features), jnp.float32),
    }


if __name__ == "__main__":
    key = jax.random.PRNGKey(0)
    k_param, k_x, k_noise = jax.random.split(key, 3)

    B, C, H, W = 2, 4, 16, 16
    LATENT = 128
    stddev = 0.1

    params = init_params(k_param, C * H * W, LATENT)
    x = jax.random.normal(k_x, (B, C, H, W), jnp.float32)

    fwd = jax.jit(generator_forward)
    reconst, (y, code) = fwd(x, stddev, params, k_noise)
    jax.block_until_ready((reconst, y, code))

    # ---- deterministic checks (encoder + decoder math) ----
    x_bf16 = x.reshape(B, -1).astype(jnp.bfloat16)
    code_ref = jnp.maximum(
        jnp.dot(x_bf16, params["w_enc"], preferred_element_type=jnp.float32)
        + params["b_enc"], 0.0)
    assert jnp.allclose(code, code_ref, atol=2e-2, rtol=2e-2), "code mismatch"

    B_pad = max(8, ((B + 7) // 8) * 8)
    noise_ref = jax.random.normal(k_noise, (B_pad, LATENT), jnp.float32)[:B]
    assert jnp.allclose(y - code, noise_ref * stddev, atol=1e-4), "noise mismatch"

    rec_ref = (jnp.dot(y.astype(jnp.bfloat16), params["w_dec"],
                       preferred_element_type=jnp.float32)
               + params["b_dec"]).reshape(B, C, H, W)
    assert jnp.allclose(reconst, rec_ref, atol=2e-2, rtol=2e-2), "reconst mismatch"

    print("KERNEL_OK")
</pallas_src>

<mosaic_0001>
module attributes {stable_mosaic.version = 11 : i64} {
  func.func @generator_kernel(%arg0: i32, %arg1: i32, %arg2: memref<1xf32, #tpu.memory_space<smem>>, %arg3: memref<8x1024xf32, #tpu.memory_space<vmem>>, %arg4: memref<1024x128xbf16, #tpu.memory_space<vmem>>, %arg5: memref<1x128xf32, #tpu.memory_space<vmem>>, %arg6: memref<8x128xf32, #tpu.memory_space<vmem>>, %arg7: memref<128x1024xbf16, #tpu.memory_space<vmem>>, %arg8: memref<1x1024xf32, #tpu.memory_space<vmem>>, %arg9: memref<8x128xf32, #tpu.memory_space<vmem>>, %arg10: memref<8x128xf32, #tpu.memory_space<vmem>>, %arg11: memref<8x1024xf32, #tpu.memory_space<vmem>>, %arg12: memref<8x128xbf16, #tpu.memory_space<vmem>>) attributes {dimension_semantics = [#tpu.dimension_semantics<arbitrary>, #tpu.dimension_semantics<arbitrary>], iteration_bounds = array<i64: 2, 1>, scalar_prefetch = 0 : i64, scratch_operands = 1 : i64, tpu.core_type = #tpu.core_type<tc>, window_params = [{transform_indices = @transform_0, window_bounds = array<i64: 1>}, {transform_indices = @transform_1, window_bounds = array<i64: 8, 1024>}, {transform_indices = @transform_2, window_bounds = array<i64: 1024, 128>}, {pipeline_mode = #tpu.pipeline_mode<synchronous>, transform_indices = @transform_3, window_bounds = array<i64: 1, 128>}, {pipeline_mode = #tpu.pipeline_mode<synchronous>, transform_indices = @transform_4, window_bounds = array<i64: 8, 128>}, {transform_indices = @transform_5, window_bounds = array<i64: 128, 1024>}, {transform_indices = @transform_6, window_bounds = array<i64: 1, 1024>}, {pipeline_mode = #tpu.pipeline_mode<synchronous>, transform_indices = @transform_7, window_bounds = array<i64: 8, 128>}, {pipeline_mode = #tpu.pipeline_mode<synchronous>, transform_indices = @transform_8, window_bounds = array<i64: 8, 128>}, {transform_indices = @transform_9, window_bounds = array<i64: 8, 1024>}]} {
    %c0_i32 = arith.constant 0 : i32
    %0 = arith.cmpi eq, %arg0, %c0_i32 : i32
    %1 = arith.extui %0 : i1 to i32
    %c0_i32_0 = arith.constant 0 : i32
    %2 = arith.cmpi ne, %1, %c0_i32_0 : i32
    scf.if %2 {
      %c0_i32_2 = arith.constant 0 : i32
      %6 = arith.cmpi eq, %arg1, %c0_i32_2 : i32
      %7 = arith.extui %6 : i1 to i32
      %c0_i32_3 = arith.constant 0 : i32
      %8 = arith.cmpi ne, %7, %c0_i32_3 : i32
      scf.if %8 {
        %cst_13 = arith.constant 0.000000e+00 : f32
        %19 = vector.broadcast %cst_13 : f32 to vector<8x128xf32>
        %c0_14 = arith.constant 0 : index
        %c0_15 = arith.constant 0 : index
        %20 = vector.load %arg9[%c0_14, %c0_15] : memref<8x128xf32, #tpu.memory_space<vmem>>, vector<8x128xf32>
        tpu.vector_store %arg9[%c0_14, %c0_15], %19 {strides = array<i32>} : memref<8x128xf32, #tpu.memory_space<vmem>>, vector<8x128xf32>,
      } else {
      }
      %c0 = arith.constant 0 : index
      %c0_4 = arith.constant 0 : index
      %9 = vector.load %arg9[%c0, %c0_4] : memref<8x128xf32, #tpu.memory_space<vmem>>, vector<8x128xf32>
      %c0_5 = arith.constant 0 : index
      %c0_6 = arith.constant 0 : index
      %10 = vector.load %arg3[%c0_5, %c0_6] : memref<8x1024xf32, #tpu.memory_space<vmem>>, vector<8x1024xf32>
      %11 = arith.truncf %10 : vector<8x1024xf32> to vector<8x1024xbf16>
      %c0_7 = arith.constant 0 : index
      %c0_8 = arith.constant 0 : index
      %12 = vector.load %arg4[%c0_7, %c0_8] : memref<1024x128xbf16, #tpu.memory_space<vmem>>, vector<1024x128xbf16>
      %cst = arith.constant dense<0.000000e+00> : vector<8x128xf32>
      %13 = tpu.matmul %11, %12, %cst {dimension_numbers = #tpu.dot_dimension_numbers<[1], [0], [0], [1], [0, 0, 1, 1], [], []>} : vector<8x1024xbf16>, vector<1024x128xbf16>, vector<8x128xf32> -> vector<8x128xf32>
      %14 = arith.addf %9, %13 : vector<8x128xf32>
      %c0_9 = arith.constant 0 : index
      %c0_10 = arith.constant 0 : index
      %15 = vector.load %arg9[%c0_9, %c0_10] : memref<8x128xf32, #tpu.memory_space<vmem>>, vector<8x128xf32>
      tpu.vector_store %arg9[%c0_9, %c0_10], %14 {strides = array<i32>} : memref<8x128xf32, #tpu.memory_space<vmem>>, vector<8x128xf32>,
      %c0_i32_11 = arith.constant 0 : i32
      %16 = arith.cmpi eq, %arg1, %c0_i32_11 : i32
      %17 = arith.extui %16 : i1 to i32
      %c0_i32_12 = arith.constant 0 : i32
      %18 = arith.cmpi ne, %17, %c0_i32_12 : i32
      scf.if %18 {
        %c0_13 = arith.constant 0 : index
        %c0_14 = arith.constant 0 : index
        %19 = vector.load %arg9[%c0_13, %c0_14] : memref<8x128xf32, #tpu.memory_space<vmem>>, vector<8x128xf32>
        %c0_15 = arith.constant 0 : index
        %c0_16 = arith.constant 0 : index
        %20 = vector.load %arg5[%c0_15, %c0_16] : memref<1x128xf32, #tpu.memory_space<vmem>>, vector<1x128xf32>
        %21 = vector.broadcast %20 : vector<1x128xf32> to vector<8x128xf32>
        %22 = arith.addf %19, %21 : vector<8x128xf32>
        %cst_17 = arith.constant 0.000000e+00 : f32
        %23 = vector.broadcast %cst_17 : f32 to vector<8x128xf32>
        %24 = arith.maximumf %22, %23 : vector<8x128xf32>
        %c0_18 = arith.constant 0 : index
        %c0_19 = arith.constant 0 : index
        %25 = vector.load %arg6[%c0_18, %c0_19] : memref<8x128xf32, #tpu.memory_space<vmem>>, vector<8x128xf32>
        %c0_20 = arith.constant 0 : index
        %26 = memref.load %arg2[%c0_20] : memref<1xf32, #tpu.memory_space<smem>>
        %27 = vector.broadcast %26 : f32 to vector<8x128xf32>
        %28 = arith.mulf %25, %27 : vector<8x128xf32>
        %29 = arith.addf %24, %28 : vector<8x128xf32>
        %c0_21 = arith.constant 0 : index
        %c0_22 = arith.constant 0 : index
        %30 = vector.load %arg9[%c0_21, %c0_22] : memref<8x128xf32, #tpu.memory_space<vmem>>, vector<8x128xf32>
        tpu.vector_store %arg9[%c0_21, %c0_22], %24 {strides = array<i32>} : memref<8x128xf32, #tpu.memory_space<vmem>>, vector<8x128xf32>,
        %c0_23 = arith.constant 0 : index
        %c0_24 = arith.constant 0 : index
        %31 = vector.load %arg10[%c0_23, %c0_24] : memref<8x128xf32, #tpu.memory_space<vmem>>, vector<8x128xf32>
        tpu.vector_store %arg10[%c0_23, %c0_24], %29 {strides = array<i32>} : memref<8x128xf32, #tpu.memory_space<vmem>>, vector<8x128xf32>,
        %32 = arith.truncf %29 : vector<8x128xf32> to vector<8x128xbf16>
        %c0_25 = arith.constant 0 : index
        %c0_26 = arith.constant 0 : index
        %33 = vector.load %arg12[%c0_25, %c0_26] : memref<8x128xbf16, #tpu.memory_space<vmem>>, vector<8x128xbf16>
        tpu.vector_store %arg12[%c0_25, %c0_26], %32 {strides = array<i32>} : memref<8x128xbf16, #tpu.memory_space<vmem>>, vector<8x128xbf16>,
      } else {
      }
    } else {
    }
    %c1_i32 = arith.constant 1 : i32
    %3 = arith.cmpi eq, %arg0, %c1_i32 : i32
    %4 = arith.extui %3 : i1 to i32
    %c0_i32_1 = arith.constant 0 : i32
    %5 = arith.cmpi ne, %4, %c0_i32_1 : i32
    scf.if %5 {
      %c0 = arith.constant 0 : index
      %c0_2 = arith.constant 0 : index
      %6 = vector.load %arg12[%c0, %c0_2] : memref<8x128xbf16, #tpu.memory_space<vmem>>, vector<8x128xbf16>
      %c0_3 = arith.constant 0 : index
      %c0_4 = arith.constant 0 : index
      %7 = vector.load %arg7[%c0_3, %c0_4] : memref<128x1024xbf16, #tpu.memory_space<vmem>>, vector<128x1024xbf16>
      %cst = arith.constant dense<0.000000e+00> : vector<8x1024xf32>
      %8 = tpu.matmul %6, %7, %cst {dimension_numbers = #tpu.dot_dimension_numbers<[1], [0], [0], [1], [0, 0, 1, 1], [], []>} : vector<8x128xbf16>, vector<128x1024xbf16>, vector<8x1024xf32> -> vector<8x1024xf32>
      %c0_5 = arith.constant 0 : index
      %c0_6 = arith.constant 0 : index
      %9 = vector.load %arg8[%c0_5, %c0_6] : memref<1x1024xf32, #tpu.memory_space<vmem>>, vector<1x1024xf32>
      %10 = vector.broadcast %9 : vector<1x1024xf32> to vector<8x1024xf32>
      %11 = arith.addf %8, %10 : vector<8x1024xf32>
      %c0_7 = arith.constant 0 : index
      %c0_8 = arith.constant 0 : index
      %12 = vector.load %arg11[%c0_7, %c0_8] : memref<8x1024xf32, #tpu.memory_space<vmem>>, vector<8x1024xf32>
      tpu.vector_store %arg11[%c0_7, %c0_8], %11 {strides = array<i32>} : memref<8x1024xf32, #tpu.memory_space<vmem>>, vector<8x1024xf32>,
    } else {
    }
    return
  }
  func.func @transform_0(%arg0: i32, %arg1: i32) -> i32 {
    %c0_i32 = arith.constant 0 : i32
    %c0_i32_0 = arith.constant 0 : i32
    return %c0_i32 : i32
  }
  func.func @transform_1(%arg0: i32, %arg1: i32) -> (i32, i32) {
    %c0_i32 = arith.constant 0 : i32
    %0 = arith.subi %c0_i32, %arg1 : i32
    %1 = arith.muli %arg0, %0 : i32
    %2 = arith.addi %arg1, %1 : i32
    %c0_i32_0 = arith.constant 0 : i32
    %c0_i32_1 = arith.constant 0 : i32
    return %c0_i32_0, %2 : i32, i32
  }
  func.func @transform_2(%arg0: i32, %arg1: i32) -> (i32, i32) {
    %c0_i32 = arith.constant 0 : i32
    %0 = arith.subi %c0_i32, %arg1 : i32
    %1 = arith.muli %arg0, %0 : i32
    %2 = arith.addi %arg1, %1 : i32
    %c0_i32_0 = arith.constant 0 : i32
    %c0_i32_1 = arith.constant 0 : i32
    return %2, %c0_i32_0 : i32, i32
  }
  func.func @transform_3(%arg0: i32, %arg1: i32) -> (i32, i32) {
    %c0_i32 = arith.constant 0 : i32
    %c0_i32_0 = arith.constant 0 : i32
    %c0_i32_1 = arith.constant 0 : i32
    return %c0_i32, %c0_i32_0 : i32, i32
  }
  func.func @transform_4(%arg0: i32, %arg1: i32) -> (i32, i32) {
    %c0_i32 = arith.constant 0 : i32
    %c0_i32_0 = arith.constant 0 : i32
    %c0_i32_1 = arith.constant 0 : i32
    return %c0_i32, %c0_i32_0 : i32, i32
  }
  func.func @transform_5(%arg0: i32, %arg1: i32) -> (i32, i32) {
    %0 = arith.muli %arg1, %arg0 : i32
    %c0_i32 = arith.constant 0 : i32
    %c0_i32_0 = arith.constant 0 : i32
    return %c0_i32, %0 : i32, i32
  }
  func.func @transform_6(%arg0: i32, %arg1: i32) -> (i32, i32) {
    %0 = arith.muli %arg1, %arg0 : i32
    %c0_i32 = arith.constant 0 : i32
    %c0_i32_0 = arith.constant 0 : i32
    return %c0_i32, %0 : i32, i32
  }
  func.func @transform_7(%arg0: i32, %arg1: i32) -> (i32, i32) {
    %c0_i32 = arith.constant 0 : i32
    %c0_i32_0 = arith.constant 0 : i32
    %c0_i32_1 = arith.constant 0 : i32
    return %c0_i32, %c0_i32_0 : i32, i32
  }
  func.func @transform_8(%arg0: i32, %arg1: i32) -> (i32, i32) {
    %c0_i32 = arith.constant 0 : i32
    %c0_i32_0 = arith.constant 0 : i32
    %c0_i32_1 = arith.constant 0 : i32
    return %c0_i32, %c0_i32_0 : i32, i32
  }
  func.func @transform_9(%arg0: i32, %arg1: i32) -> (i32, i32) {
    %0 = arith.muli %arg1, %arg0 : i32
    %c0_i32 = arith.constant 0 : i32
    %c0_i32_0 = arith.constant 0 : i32
    return %c0_i32, %0 : i32, i32
  }
}

</mosaic_0001>

<llo_original>
// kernel: generator_forward.1
$region0: #{generator_forward.1}
  #allocation0 [shape = 'u32[]', space=smem, size = 0x4, offset = 0x4, fixed_abs, tag = 'smem constant byte address 0x4 - core index']
  #allocation1 [shape = 'u32[144,128]{1,0:T(1,128)}', space=vmem, size = 0x12000, scoped, tag = 'internal scratch']
  #allocation2 [shape = 'bf16[8,128]{1,0:T(8,128)(2,1)}', space=vmem, size = 0x800, scoped, tag = 'scratch operand']
  #allocation3 [shape = 'f32[1]{0:T(128)S(6)}', space=smem, size = 0x200, scoped, tag = 'scoped memory for generator_forward.1']
  %s0 = inlined_call_operand.<no memory space> [shape: f32[1], index: 0, kind: input, shape index: {}]
  %s1 = inlined_call_operand.vmem [shape: f32[8,1024], index: 1, kind: input, shape index: {}]
  %s2 = inlined_call_operand.hbm [shape: bf16[1024,128], index: 2, kind: input, shape index: {}]
  %s3 = inlined_call_operand.vmem [shape: f32[1,128], index: 3, kind: input, shape index: {}]
  %s4 = inlined_call_operand.vmem [shape: f32[8,128], index: 4, kind: input, shape index: {}]
  %s5 = inlined_call_operand.hbm [shape: bf16[128,1024], index: 5, kind: input, shape index: {}]
  %s6 = inlined_call_operand.vmem [shape: f32[1,1024], index: 6, kind: input, shape index: {}]
  %s7 = inlined_call_operand.vmem [shape: f32[8,128], index: 7, kind: output, shape index: {0}]
  %s8 = inlined_call_operand.vmem [shape: f32[8,128], index: 8, kind: output, shape index: {1}]
  %s9 = inlined_call_operand.vmem [shape: f32[8,1024], index: 9, kind: output, shape index: {2}]
  %10 = xla_tuple %s7, %s8, %s9
  %s11 = sld [smem:[#allocation0]]
  $region101: #{generator_forward.1} parent=0
    _
  %s13 = ssub.s32 1, %s11
  %s14 = scalar_select 0, %s13, %s11
  %15 = sst [smem:[#allocation3]] %s0
  $region1: #{generator_forward.1} parent=0
    #allocation4 [shape = 'u8[524288]{0}', space=vmem, size = 0x80000, scoped, tag = 'input window, operand 2']
    #allocation5 [shape = 's32[2]{0}', space=sflag, size = 0x8, scoped, tag = 'scoped memory for generator_forward.1']
    #allocation6 [shape = 'u8[524288]{0}', space=vmem, size = 0x80000, scoped, tag = 'input window, operand 5']
    #allocation7 [shape = 's32[2]{0}', space=sflag, size = 0x8, scoped, tag = 'scoped memory for generator_forward.1']
    %16 = vsyncpa [#allocation5], 0
    %s17 = scalar_lea.sflag [#allocation5], 1
    %18 = vsyncpa %s17, 0
    %19 = vsyncpa [#allocation7], 0
    %s20 = scalar_lea.sflag [#allocation7], 1
    %21 = vsyncpa %s20, 0
    loop: start=0, step=1, limit=4
    $region2: #{generator_forward.1} parent=1 // loop_pre_header
      _
    $region3: #{generator_forward.1} parent=1 // loop_header
      %s23 = sphi 0, %s27
      %p24 = scmp.ge.s32.totalorder %s23, 4
      %s30 = sphi 0, %s42
      %s31 = sphi 0, %s38
      %s32 = sphi 0, %s30
      %s33 = sphi 0, %s31
      %s34 = sphi 0, %s32
      %s35 = sphi 0, %s33
      %s43 = sphi 0, %s43
      %s45 = sphi 0, %s43
      %s46 = sphi 0, %s45
      %s60 = sphi 0, %s46
      %s72 = sphi 0, %s74
      %s75 = sphi 0, %s72
      %s76 = sphi 0, %s75
      %s92 = sphi 0, %s76
      %s104 = sphi 0, %s106
      %s107 = sphi 0, %s104
      %s108 = sphi 0, %s107
      %s124 = sphi 0, %s108
      %s128 = sphi 0, %s128
      %s130 = sphi 0, %s128
      %s131 = sphi 0, %s130
      %s145 = sphi 0, %s131
      %s149 = sphi 0, %s149
      %s151 = sphi 0, %s149
      %s152 = sphi 0, %s151
      %s166 = sphi 0, %s152
      %s174 = sphi 0, %s176
      %s177 = sphi 0, %s174
      %s178 = sphi 0, %s177
      %s194 = sphi 0, %s178
      %s202 = sphi 0, %s204
      %s205 = sphi 0, %s202
      %s206 = sphi 0, %s205
      %s222 = sphi 0, %s206
      %s226 = sphi 0, %s226
      %s228 = sphi 0, %s226
      %s229 = sphi 0, %s228
      %s243 = sphi 0, %s229
      %s247 = sphi 0, %s247
      %s249 = sphi 0, %s247
      %s250 = sphi 0, %s249
      %s264 = sphi 0, %s250
      %s272 = sphi 0, %s274
      %s275 = sphi 0, %s272
      %s276 = sphi 0, %s275
      %s292 = sphi 0, %s276
    $region4: #{generator_forward.1} parent=1 // loop_header_branch
      %26 = sbr.rel (%p24) target = $region8
    $region5: #{generator_forward.1} parent=1 // loop_body
      %s28 = ssub.s32 %s23, 1
      %s29 = ssub.s32 %s23, 2
      %s36 = sadd.s32 1, %s31
      %p37 = scmp.ge.s32.totalorder %s36, 1
      %s38 = scalar_select %p37, 0, %s36
      %s39 = sadd.s32 1, %s30
      %s40 = scalar_select %p37, %s39, %s30
      %p41 = scmp.ge.s32.totalorder %s40, 2
      %s42 = scalar_select %p41, 0, %s40
      %s44 = sadd.s32 %s43, 1
      %p47 = scmp.eq.s32.totalorder %s23, 1
      %p48 = scmp.ne.s32.totalorder %s43, %s45
      %p49 = scmp.eq.s32.totalorder %s23, 0
      %p50 = por %p48, %p49
      %p51 = scmp.ne.s32.totalorder %s43, %s45
      %p52 = scmp.eq.s32.totalorder %s28, 1
      %p53 = por %p51, %p52
      %p54 = scmp.ne.s32.totalorder %s45, %s46
      %p55 = scmp.eq.s32.totalorder %s28, 0
      %p56 = por %p54, %p55
      %p57 = scmp.ne.s32.totalorder %s45, %s46
      %p58 = scmp.eq.s32.totalorder %s29, 1
      %p59 = por %p57, %p58
      %p61 = scmp.ne.s32.totalorder %s46, %s60
      %p62 = scmp.eq.s32.totalorder %s29, 0
      %p63 = por %p61, %p62
      %s64 = ssub.s32 0, %s31
      %s65 = smul.u32 %s30, %s64
      %s66 = sadd.s32 %s31, %s65
      %s67 = ssub.s32 0, %s38
      %s68 = smul.u32 %s42, %s67
      %s69 = sadd.s32 %s38, %s68
      %s70 = ssub.s32 %s66, %s69
      %p71 = scmp.eq.s32.totalorder %s70, 0
      %s73 = sadd.s32 %s72, 1
      %s74 = scalar_select %p71, %s72, %s73
      %p77 = pneg %p71
      %p78 = scmp.eq.s32.totalorder %s23, 1
      %p79 = por %p77, %p78
      %p80 = scmp.ne.s32.totalorder %s72, %s75
      %p81 = scmp.eq.s32.totalorder %s23, 0
      %p82 = por %p80, %p81
      %p83 = scmp.ne.s32.totalorder %s72, %s75
      %p84 = scmp.eq.s32.totalorder %s28, 1
      %p85 = por %p83, %p84
      %p86 = scmp.ne.s32.totalorder %s75, %s76
      %p87 = scmp.eq.s32.totalorder %s28, 0
      %p88 = por %p86, %p87
      %p89 = scmp.ne.s32.totalorder %s75, %s76
      %p90 = scmp.eq.s32.totalorder %s29, 1
      %p91 = por %p89, %p90
      %p93 = scmp.ne.s32.totalorder %s76, %s92
      %p94 = scmp.eq.s32.totalorder %s29, 0
      %p95 = por %p93, %p94
      %s96 = ssub.s32 0, %s31
      %s97 = smul.u32 %s30, %s96
      %s98 = sadd.s32 %s31, %s97
      %s99 = ssub.s32 0, %s38
      %s100 = smul.u32 %s42, %s99
      %s101 = sadd.s32 %s38, %s100
      %s102 = ssub.s32 %s98, %s101
      %p103 = scmp.eq.s32.totalorder %s102, 0
      %s105 = sadd.s32 %s104, 1
      %s106 = scalar_select %p103, %s104, %s105
      %p109 = pneg %p103
      %p110 = scmp.eq.s32.totalorder %s23, 1
      %p111 = por %p109, %p110
      %p112 = scmp.ne.s32.totalorder %s104, %s107
      %p113 = scmp.eq.s32.totalorder %s23, 0
      %p114 = por %p112, %p113
      %p115 = scmp.ne.s32.totalorder %s104, %s107
      %p116 = scmp.eq.s32.totalorder %s28, 1
      %p117 = por %p115, %p116
      %p118 = scmp.ne.s32.totalorder %s107, %s108
      %p119 = scmp.eq.s32.totalorder %s28, 0
      %p120 = por %p118, %p119
      %p121 = scmp.ne.s32.totalorder %s107, %s108
      %p122 = scmp.eq.s32.totalorder %s29, 1
      %p123 = por %p121, %p122
      %p125 = scmp.ne.s32.totalorder %s108, %s124
      %p126 = scmp.eq.s32.totalorder %s29, 0
      %p127 = por %p125, %p126
      %s129 = sadd.s32 %s128, 1
      %p132 = scmp.eq.s32.totalorder %s23, 1
      %p133 = scmp.ne.s32.totalorder %s128, %s130
      %p134 = scmp.eq.s32.totalorder %s23, 0
      %p135 = por %p133, %p134
      %p136 = scmp.ne.s32.totalorder %s128, %s130
      %p137 = scmp.eq.s32.totalorder %s28, 1
      %p138 = por %p136, %p137
      %p139 = scmp.ne.s32.totalorder %s130, %s131
      %p140 = scmp.eq.s32.totalorder %s28, 0
      %p141 = por %p139, %p140
      %p142 = scmp.ne.s32.totalorder %s130, %s131
      %p143 = scmp.eq.s32.totalorder %s29, 1
      %p144 = por %p142, %p143
      %p146 = scmp.ne.s32.totalorder %s131, %s145
      %p147 = scmp.eq.s32.totalorder %s29, 0
      %p148 = por %p146, %p147
      %s150 = sadd.s32 %s149, 1
      %p153 = scmp.eq.s32.totalorder %s23, 1
      %p154 = scmp.ne.s32.totalorder %s149, %s151
      %p155 = scmp.eq.s32.totalorder %s23, 0
      %p156 = por %p154, %p155
      %p157 = scmp.ne.s32.totalorder %s149, %s151
      %p158 = scmp.eq.s32.totalorder %s28, 1
      %p159 = por %p157, %p158
      %p160 = scmp.ne.s32.totalorder %s151, %s152
      %p161 = scmp.eq.s32.totalorder %s28, 0
      %p162 = por %p160, %p161
      %p163 = scmp.ne.s32.totalorder %s151, %s152
      %p164 = scmp.eq.s32.totalorder %s29, 1
      %p165 = por %p163, %p164
      %p167 = scmp.ne.s32.totalorder %s152, %s166
      %p168 = scmp.eq.s32.totalorder %s29, 0
      %p169 = por %p167, %p168
      %s170 = smul.u32 %s31, %s30
      %s171 = smul.u32 %s38, %s42
      %s172 = ssub.s32 %s170, %s171
      %p173 = scmp.eq.s32.totalorder %s172, 0
      %s175 = sadd.s32 %s174, 1
      %s176 = scalar_select %p173, %s174, %s175
      %p179 = pneg %p173
      %p180 = scmp.eq.s32.totalorder %s23, 1
      %p181 = por %p179, %p180
      %p182 = scmp.ne.s32.totalorder %s174, %s177
      %p183 = scmp.eq.s32.totalorder %s23, 0
      %p184 = por %p182, %p183
      %p185 = scmp.ne.s32.totalorder %s174, %s177
      %p186 = scmp.eq.s32.totalorder %s28, 1
      %p187 = por %p185, %p186
      %p188 = scmp.ne.s32.totalorder %s177, %s178
      %p189 = scmp.eq.s32.totalorder %s28, 0
      %p190 = por %p188, %p189
      %p191 = scmp.ne.s32.totalorder %s177, %s178
      %p192 = scmp.eq.s32.totalorder %s29, 1
      %p193 = por %p191, %p192
      %p195 = scmp.ne.s32.totalorder %s178, %s194
      %p196 = scmp.eq.s32.totalorder %s29, 0
      %p197 = por %p195, %p196
      %s198 = smul.u32 %s31, %s30
      %s199 = smul.u32 %s38, %s42
      %s200 = ssub.s32 %s198, %s199
      %p201 = scmp.eq.s32.totalorder %s200, 0
      %s203 = sadd.s32 %s202, 1
      %s204 = scalar_select %p201, %s202, %s203
      %p207 = pneg %p201
      %p208 = scmp.eq.s32.totalorder %s23, 1
      %p209 = por %p207, %p208
      %p210 = scmp.ne.s32.totalorder %s202, %s205
      %p211 = scmp.eq.s32.totalorder %s23, 0
      %p212 = por %p210, %p211
      %p213 = scmp.ne.s32.totalorder %s202, %s205
      %p214 = scmp.eq.s32.totalorder %s28, 1
      %p215 = por %p213, %p214
      %p216 = scmp.ne.s32.totalorder %s205, %s206
      %p217 = scmp.eq.s32.totalorder %s28, 0
      %p218 = por %p216, %p217
      %p219 = scmp.ne.s32.totalorder %s205, %s206
      %p220 = scmp.eq.s32.totalorder %s29, 1
      %p221 = por %p219, %p220
      %p223 = scmp.ne.s32.totalorder %s206, %s222
      %p224 = scmp.eq.s32.totalorder %s29, 0
      %p225 = por %p223, %p224
      %s227 = sadd.s32 %s226, 1
      %p230 = scmp.eq.s32.totalorder %s23, 1
      %p231 = scmp.ne.s32.totalorder %s226, %s228
      %p232 = scmp.eq.s32.totalorder %s23, 0
      %p233 = por %p231, %p232
      %p234 = scmp.ne.s32.totalorder %s226, %s228
      %p235 = scmp.eq.s32.totalorder %s28, 1
      %p236 = por %p234, %p235
      %p237 = scmp.ne.s32.totalorder %s228, %s229
      %p238 = scmp.eq.s32.totalorder %s28, 0
      %p239 = por %p237, %p238
      %p240 = scmp.ne.s32.totalorder %s228, %s229
      %p241 = scmp.eq.s32.totalorder %s29, 1
      %p242 = por %p240, %p241
      %p244 = scmp.ne.s32.totalorder %s229, %s243
      %p245 = scmp.eq.s32.totalorder %s29, 0
      %p246 = por %p244, %p245
      %s248 = sadd.s32 %s247, 1
      %p251 = scmp.eq.s32.totalorder %s23, 1
      %p252 = scmp.ne.s32.totalorder %s247, %s249
      %p253 = scmp.eq.s32.totalorder %s23, 0
      %p254 = por %p252, %p253
      %p255 = scmp.ne.s32.totalorder %s247, %s249
      %p256 = scmp.eq.s32.totalorder %s28, 1
      %p257 = por %p255, %p256
      %p258 = scmp.ne.s32.totalorder %s249, %s250
      %p259 = scmp.eq.s32.totalorder %s28, 0
      %p260 = por %p258, %p259
      %p261 = scmp.ne.s32.totalorder %s249, %s250
      %p262 = scmp.eq.s32.totalorder %s29, 1
      %p263 = por %p261, %p262
      %p265 = scmp.ne.s32.totalorder %s250, %s264
      %p266 = scmp.eq.s32.totalorder %s29, 0
      %p267 = por %p265, %p266
      %s268 = smul.u32 %s31, %s30
      %s269 = smul.u32 %s38, %s42
      %s270 = ssub.s32 %s268, %s269
      %p271 = scmp.eq.s32.totalorder %s270, 0
      %s273 = sadd.s32 %s272, 1
      %s274 = scalar_select %p271, %s272, %s273
      %p277 = pneg %p271
      %p278 = scmp.eq.s32.totalorder %s23, 1
      %p279 = por %p277, %p278
      %p280 = scmp.ne.s32.totalorder %s272, %s275
      %p281 = scmp.eq.s32.totalorder %s23, 0
      %p282 = por %p280, %p281
      %p283 = scmp.ne.s32.totalorder %s272, %s275
      %p284 = scmp.eq.s32.totalorder %s28, 1
      %p285 = por %p283, %p284
      %p286 = scmp.ne.s32.totalorder %s275, %s276
      %p287 = scmp.eq.s32.totalorder %s28, 0
      %p288 = por %p286, %p287
      %p289 = scmp.ne.s32.totalorder %s275, %s276
      %p290 = scmp.eq.s32.totalorder %s29, 1
      %p291 = por %p289, %p290
      %p293 = scmp.ne.s32.totalorder %s276, %s292
      %p294 = scmp.eq.s32.totalorder %s29, 0
      %p295 = por %p293, %p294
      %p296 = scmp.le.s32.totalorder 1, %s23
      %p297 = scmp.lt.s32.totalorder %s23, 3
      %p298 = pnand %p296, %p297
      %p299 = pneg %p298
      // Predicated region
      $region9: #{generator_forward.1} parent=5 // pred_check
        _
      $region10: #{generator_forward.1} parent=5 // pred_check_branch
        %301 = sbr.rel (%p298) target = $region12
      $region11: #{generator_forward.1} parent=5 // pred_region
        %s302 = ssub.s32 %s23, 1
        // Predicated region
        $region13: #{generator_forward.1} parent=11 // pred_check
          %p303 = pneg %p56
        $region14: #{generator_forward.1} parent=11 // pred_check_branch
          %305 = sbr.rel (%p303) target = $region16
        $region15: #{generator_forward.1} parent=11 // pred_region
          _
        $region16: #{generator_forward.1} parent=11 // pred_fallthru
          _
        // Predicated region
        $region17: #{generator_forward.1} parent=11 // pred_check
          %p306 = pneg %p141
        $region18: #{generator_forward.1} parent=11 // pred_check_branch
          %308 = sbr.rel (%p306) target = $region20
        $region19: #{generator_forward.1} parent=11 // pred_region
          _
        $region20: #{generator_forward.1} parent=11 // pred_fallthru
          _
        // Predicated region
        $region21: #{generator_forward.1} parent=11 // pred_check
          %p309 = pneg %p162
        $region22: #{generator_forward.1} parent=11 // pred_check_branch
          %311 = sbr.rel (%p309) target = $region24
        $region23: #{generator_forward.1} parent=11 // pred_region
          _
        $region24: #{generator_forward.1} parent=11 // pred_fallthru
          _
      $region12: #{generator_forward.1} parent=5 // pred_fallthru
        _
      %p312 = scmp.lt.s32.totalorder %s23, 2
      // Predicated region
      $region25: #{generator_forward.1} parent=5 // pred_check
        %p313 = pneg %p312
      $region26: #{generator_forward.1} parent=5 // pred_check_branch
        %315 = sbr.rel (%p313) target = $region28
      $region27: #{generator_forward.1} parent=5 // pred_region
        // Predicated region
        $region29: #{generator_forward.1} parent=27 // pred_check
          %p316 = pneg %p82
        $region30: #{generator_forward.1} parent=27 // pred_check_branch
          %318 = sbr.rel (%p316) target = $region32
        $region31: #{generator_forward.1} parent=27 // pred_region
          %s319 = ssub.s32 0, %s31
          %s320 = smul.u32 %s30, %s319
          %s321 = sadd.s32 %s31, %s320
          %s322 = smul.u32 8, %s321
          %p323 = scmp.lt.s32.totalorder %s322, 7
          %s324 = scalar_select %p323, %s322, 7
          %s325 = smul.addr %s324, 8
          %s326 = scalar_lea.vmem %s1, %s325
          %s327 = ssub.s32 0, %s31
          %s328 = smul.u32 %s30, %s327
          %s329 = sadd.s32 %s31, %s328
          %s330 = smul.u32 8, %s329
        $region32: #{generator_forward.1} parent=27 // pred_fallthru
          _
        // Predicated region
        $region33: #{generator_forward.1} parent=27 // pred_check
          %p331 = pneg %p114
        $region34: #{generator_forward.1} parent=27 // pred_check_branch
          %333 = sbr.rel (%p331) target = $region36
        $region35: #{generator_forward.1} parent=27 // pred_region
          %s334 = sand.u32 %s104, 1
          %s335 = scalar_lea.sflag [#allocation5], %s334
          %s336 = sand.u32 %s104, 1
          %s337 = smul.addr %s336, 512
          %s338 = scalar_lea.vmem [#allocation4], %s337
          %s339 = ssub.s32 0, %s31
          %s340 = smul.u32 %s30, %s339
          %s341 = sadd.s32 %s31, %s340
          %s342 = smul.u32 128, %s341
          %s344 = ssub.s32 8192, 8192
          %345 = vsyncadd %s335, %s344
          %s346 = smul.addr %s342, 64
          %s347 = scalar_lea.hbm %s2, %s346
          %s348 = sshll.u32 %s338, 4
          %s349 = int_to_ptr.vmem [resolvable:$true] %s348
          %354 = dma.hbm_to_vmem [thread:$0]  %s347, 8192, %s349, %s335, 64, 64, 4
        $region36: #{generator_forward.1} parent=27 // pred_fallthru
          _
        // Predicated region
        $region37: #{generator_forward.1} parent=27 // pred_check
          %p355 = pneg %p184
        $region38: #{generator_forward.1} parent=27 // pred_check_branch
          %357 = sbr.rel (%p355) target = $region40
        $region39: #{generator_forward.1} parent=27 // pred_region
          %s358 = sand.u32 %s174, 1
          %s359 = scalar_lea.sflag [#allocation7], %s358
          %s360 = sand.u32 %s174, 1
          %s361 = smul.addr %s360, 512
          %s362 = scalar_lea.vmem [#allocation6], %s361
          %s363 = smul.u32 %s31, %s30
          %s364 = smul.u32 8, %s363
          %s366 = ssub.s32 8192, 8192
          %367 = vsyncadd %s359, %s366
          %s368 = smul.addr %s364, 64
          %s369 = scalar_lea.hbm %s5, %s368
          %s370 = sshll.u32 %s362, 4
          %s371 = int_to_ptr.vmem [resolvable:$true] %s370
          %376 = dma.hbm_to_vmem [thread:$0]  %s369, 8192, %s371, %s359, 512, 512, 32
        $region40: #{generator_forward.1} parent=27 // pred_fallthru
          _
        // Predicated region
        $region41: #{generator_forward.1} parent=27 // pred_check
          %p377 = pneg %p212
        $region42: #{generator_forward.1} parent=27 // pred_check_branch
          %379 = sbr.rel (%p377) target = $region44
        $region43: #{generator_forward.1} parent=27 // pred_region
          %s380 = smul.u32 %s31, %s30
          %s381 = smul.u32 8, %s380
          %p382 = scmp.lt.s32.totalorder %s381, 7
          %s383 = scalar_select %p382, %s381, 7
          %s384 = scalar_lea.vmem %s6, %s383
          %s385 = smul.u32 %s31, %s30
          %s386 = smul.u32 8, %s385
        $region44: #{generator_forward.1} parent=27 // pred_fallthru
          _
      $region28: #{generator_forward.1} parent=5 // pred_fallthru
        _
      %p387 = scmp.le.s32.totalorder 1, %s23
      %p388 = scmp.lt.s32.totalorder %s23, 3
      %p389 = pnand %p387, %p388
      %p390 = pneg %p389
      // Predicated region
      $region45: #{generator_forward.1} parent=5 // pred_check
        _
      $region46: #{generator_forward.1} parent=5 // pred_check_branch
        %392 = sbr.rel (%p389) target = $region48
      $region47: #{generator_forward.1} parent=5 // pred_region
        %s393 = ssub.s32 %s23, 1
        %s394 = sand.u32 %s107, 1
        %s395 = scalar_lea.sflag [#allocation5], %s394
        %s396 = sand.u32 %s107, 1
        %s397 = smul.addr %s396, 512
        %s398 = scalar_lea.vmem [#allocation4], %s397
        // Predicated region
        $region49: #{generator_forward.1} parent=47 // pred_check
          %p399 = pneg %p120
        $region50: #{generator_forward.1} parent=47 // pred_check_branch
          %401 = sbr.rel (%p399) target = $region52
        $region51: #{generator_forward.1} parent=47 // pred_region
          %402 = dma.done %s395, 8192
        $region52: #{generator_forward.1} parent=47 // pred_fallthru
          _
        %s403 = sand.u32 %s177, 1
        %s404 = scalar_lea.sflag [#allocation7], %s403
        %s405 = sand.u32 %s177, 1
        %s406 = smul.addr %s405, 512
        %s407 = scalar_lea.vmem [#allocation6], %s406
        // Predicated region
        $region53: #{generator_forward.1} parent=47 // pred_check
          %p408 = pneg %p190
        $region54: #{generator_forward.1} parent=47 // pred_check_branch
          %410 = sbr.rel (%p408) target = $region56
        $region55: #{generator_forward.1} parent=47 // pred_region
          %411 = dma.done %s404, 8192
        $region56: #{generator_forward.1} parent=47 // pred_fallthru
          _
        %p412 = pneg %p56
        %p413 = pneg %p53
        %s414 = ssub.s32 0, %s33
        %s415 = smul.u32 %s32, %s414
        %s416 = sadd.s32 %s33, %s415
        %s417 = smul.u32 8, %s416
        %p418 = scmp.lt.s32.totalorder %s417, 7
        %s419 = scalar_select %p418, %s417, 7
        %s420 = smul.addr %s419, 8
        %s421 = scalar_lea.vmem %s1, %s420
        %p422 = pneg %p88
        %p423 = pneg %p85
        %s424 = sand.u32 %s107, 1
        %s425 = scalar_lea.sflag [#allocation5], %s424
        %s426 = sand.u32 %s107, 1
        %s427 = smul.addr %s426, 512
        %s428 = scalar_lea.vmem [#allocation4], %s427
        %p429 = pneg %p120
        %p430 = pneg %p117
        %p431 = pneg %p141
        %p432 = pneg %p138
        %p433 = pneg %p162
        %p434 = pneg %p159
        %s435 = sand.u32 %s177, 1
        %s436 = scalar_lea.sflag [#allocation7], %s435
        %s437 = sand.u32 %s177, 1
        %s438 = smul.addr %s437, 512
        %s439 = scalar_lea.vmem [#allocation6], %s438
        %p440 = pneg %p190
        %p441 = pneg %p187
        %s442 = smul.u32 %s33, %s32
        %s443 = smul.u32 8, %s442
        %p444 = scmp.lt.s32.totalorder %s443, 7
        %s445 = scalar_select %p444, %s443, 7
        %s446 = scalar_lea.vmem %s6, %s445
        %p447 = pneg %p218
        %p448 = pneg %p215
        %p449 = pneg %p239
        %p450 = pneg %p236
        %p451 = pneg %p260
        %p452 = pneg %p257
        %p453 = pneg %p288
        %p454 = pneg %p285
        %s455 = smul.u32 %s33, %s32
        %s456 = smul.u32 8, %s455
        %p457 = scmp.lt.s32.totalorder %s456, 7
        %s458 = scalar_select %p457, %s456, 7
        %s459 = smul.addr %s458, 8
        %s460 = scalar_lea.vmem %s9, %s459
        %s461 = ssub.s32 0, %s33
        %s462 = smul.u32 %s32, %s461
        %s463 = sadd.s32 %s33, %s462
        %s464 = smul.u32 8, %s463
        %p465 = scmp.lt.s32.totalorder %s464, 7
        %s466 = scalar_select %p465, %s464, 7
        %s467 = smul.addr %s466, 8
        %s468 = scalar_lea.vmem %s1, %s467
        %s469 = ssub.s32 0, %s33
        %s470 = smul.u32 %s32, %s469
        %s471 = sadd.s32 %s33, %s470
        %s472 = smul.u32 8, %s471
        %s473 = ssub.s32 0, %s33
        %s474 = smul.u32 %s32, %s473
        %s475 = sadd.s32 %s33, %s474
        %s476 = smul.u32 128, %s475
        %s477 = smul.u32 %s33, %s32
        %s478 = smul.u32 8, %s477
        %s479 = smul.u32 %s33, %s32
        %s480 = smul.u32 8, %s479
        %p481 = scmp.lt.s32.totalorder %s480, 7
        %s482 = scalar_select %p481, %s480, 7
        %s483 = scalar_lea.vmem %s6, %s482
        %s484 = smul.u32 %s33, %s32
        %s485 = smul.u32 8, %s484
        %s486 = smul.u32 %s33, %s32
        %s487 = smul.u32 8, %s486
        %p488 = scmp.lt.s32.totalorder %s487, 7
        %s489 = scalar_select %p488, %s487, 7
        %s490 = smul.addr %s489, 8
        %s491 = scalar_lea.vmem %s9, %s490
        %s492 = smul.u32 %s33, %s32
        %s493 = smul.u32 8, %s492
        %p495 = scmp.eq.s32.totalorder %s32, 0
        // Predicated region
        $region57: #{generator_forward.1} parent=47 // pred_check
          %p496 = pneg %p495
        $region58: #{generator_forward.1} parent=47 // pred_check_branch
          %498 = sbr.rel (%p496) target = $region60
        $region59: #{generator_forward.1} parent=47 // pred_region
          %p499 = scmp.eq.s32.totalorder %s33, 0
          // Predicated region
          $region61: #{generator_forward.1} parent=59 // pred_check
            %p500 = pneg %p499
          $region62: #{generator_forward.1} parent=59 // pred_check_branch
            %502 = sbr.rel (%p500) target = $region64
          $region63: #{generator_forward.1} parent=59 // pred_region
            %503 = vst [vmem:[%s7] sm:$0xff] 0.0
          $region64: #{generator_forward.1} parent=59 // pred_fallthru
            _
          %v504 = vld [vmem:[%s7] sm:$0xff]
          %v505 = vld [vmem:[%s468] sm:$0xff]
          %v506 = vld [vmem:[%s468 + $0x8] sm:$0xff]
          %v507 = vld [vmem:[%s468 + $0x10] sm:$0xff]
          %v508 = vld [vmem:[%s468 + $0x18] sm:$0xff]
          %v509 = vld [vmem:[%s468 + $0x20] sm:$0xff]
          %v510 = vld [vmem:[%s468 + $0x28] sm:$0xff]
          %v511 = vld [vmem:[%s468 + $0x30] sm:$0xff]
          %v512 = vld [vmem:[%s468 + $0x38] sm:$0xff]
          %v513 = vpack.c.bf16 %v505, %v505
          %v514 = vpack.c.bf16 %v506, %v506
          %v515 = vpack.c.bf16 %v507, %v507
          %v516 = vpack.c.bf16 %v508, %v508
          %v517 = vpack.c.bf16 %v509, %v509
          %v518 = vpack.c.bf16 %v510, %v510
          %v519 = vpack.c.bf16 %v511, %v511
          %v520 = vpack.c.bf16 %v512, %v512
          %v521 = vld [vmem:[%s398] sm:$0xf]
          %v522 = vld [vmem:[%s398 + $0x4] sm:$0xf]
          %v523 = vld [vmem:[%s398 + $0x8] sm:$0xf]
          %v524 = vld [vmem:[%s398 + $0xc] sm:$0xf]
          %v525 = vld [vmem:[%s398 + $0x10] sm:$0xf]
          %v526 = vld [vmem:[%s398 + $0x14] sm:$0xf]
          %v527 = vld [vmem:[%s398 + $0x18] sm:$0xf]
          %v528 = vld [vmem:[%s398 + $0x1c] sm:$0xf]
          %v529 = vld [vmem:[%s398 + $0x20] sm:$0xf]
          %v530 = vld [vmem:[%s398 + $0x24] sm:$0xf]
          %v531 = vld [vmem:[%s398 + $0x28] sm:$0xf]
          %v532 = vld [vmem:[%s398 + $0x2c] sm:$0xf]
          %v533 = vld [vmem:[%s398 + $0x30] sm:$0xf]
          %v534 = vld [vmem:[%s398 + $0x34] sm:$0xf]
          %v535 = vld [vmem:[%s398 + $0x38] sm:$0xf]
          %v536 = vld [vmem:[%s398 + $0x3c] sm:$0xf]
          %v537 = vld [vmem:[%s398 + $0x40] sm:$0xf]
          %v538 = vld [vmem:[%s398 + $0x44] sm:$0xf]
          %v539 = vld [vmem:[%s398 + $0x48] sm:$0xf]
          %v540 = vld [vmem:[%s398 + $0x4c] sm:$0xf]
          %v541 = vld [vmem:[%s398 + $0x50] sm:$0xf]
          %v542 = vld [vmem:[%s398 + $0x54] sm:$0xf]
          %v543 = vld [vmem:[%s398 + $0x58] sm:$0xf]
          %v544 = vld [vmem:[%s398 + $0x5c] sm:$0xf]
          %v545 = vld [vmem:[%s398 + $0x60] sm:$0xf]
          %v546 = vld [vmem:[%s398 + $0x64] sm:$0xf]
          %v547 = vld [vmem:[%s398 + $0x68] sm:$0xf]
          %v548 = vld [vmem:[%s398 + $0x6c] sm:$0xf]
          %v549 = vld [vmem:[%s398 + $0x70] sm:$0xf]
          %v550 = vld [vmem:[%s398 + $0x74] sm:$0xf]
          %v551 = vld [vmem:[%s398 + $0x78] sm:$0xf]
          %v552 = vld [vmem:[%s398 + $0x7c] sm:$0xf]
          %v553 = vld [vmem:[%s398 + $0x80] sm:$0xf]
          %v554 = vld [vmem:[%s398 + $0x84] sm:$0xf]
          %v555 = vld [vmem:[%s398 + $0x88] sm:$0xf]
          %v556 = vld [vmem:[%s398 + $0x8c] sm:$0xf]
          %v557 = vld [vmem:[%s398 + $0x90] sm:$0xf]
          %v558 = vld [vmem:[%s398 + $0x94] sm:$0xf]
          %v559 = vld [vmem:[%s398 + $0x98] sm:$0xf]
          %v560 = vld [vmem:[%s398 + $0x9c] sm:$0xf]
          %v561 = vld [vmem:[%s398 + $0xa0] sm:$0xf]
          %v562 = vld [vmem:[%s398 + $0xa4] sm:$0xf]
          %v563 = vld [vmem:[%s398 + $0xa8] sm:$0xf]
          %v564 = vld [vmem:[%s398 + $0xac] sm:$0xf]
          %v565 = vld [vmem:[%s398 + $0xb0] sm:$0xf]
          %v566 = vld [vmem:[%s398 + $0xb4] sm:$0xf]
          %v567 = vld [vmem:[%s398 + $0xb8] sm:$0xf]
          %v568 = vld [vmem:[%s398 + $0xbc] sm:$0xf]
          %v569 = vld [vmem:[%s398 + $0xc0] sm:$0xf]
          %v570 = vld [vmem:[%s398 + $0xc4] sm:$0xf]
          %v571 = vld [vmem:[%s398 + $0xc8] sm:$0xf]
          %v572 = vld [vmem:[%s398 + $0xcc] sm:$0xf]
          %v573 = vld [vmem:[%s398 + $0xd0] sm:$0xf]
          %v574 = vld [vmem:[%s398 + $0xd4] sm:$0xf]
          %v575 = vld [vmem:[%s398 + $0xd8] sm:$0xf]
          %v576 = vld [vmem:[%s398 + $0xdc] sm:$0xf]
          %v577 = vld [vmem:[%s398 + $0xe0] sm:$0xf]
          %v578 = vld [vmem:[%s398 + $0xe4] sm:$0xf]
          %v579 = vld [vmem:[%s398 + $0xe8] sm:$0xf]
          %v580 = vld [vmem:[%s398 + $0xec] sm:$0xf]
          %v581 = vld [vmem:[%s398 + $0xf0] sm:$0xf]
          %v582 = vld [vmem:[%s398 + $0xf4] sm:$0xf]
          %v583 = vld [vmem:[%s398 + $0xf8] sm:$0xf]
          %v584 = vld [vmem:[%s398 + $0xfc] sm:$0xf]
          %v585 = vld [vmem:[%s398 + $0x100] sm:$0xf]
          %v586 = vld [vmem:[%s398 + $0x104] sm:$0xf]
          %v587 = vld [vmem:[%s398 + $0x108] sm:$0xf]
          %v588 = vld [vmem:[%s398 + $0x10c] sm:$0xf]
          %v589 = vld [vmem:[%s398 + $0x110] sm:$0xf]
          %v590 = vld [vmem:[%s398 + $0x114] sm:$0xf]
          %v591 = vld [vmem:[%s398 + $0x118] sm:$0xf]
          %v592 = vld [vmem:[%s398 + $0x11c] sm:$0xf]
          %v593 = vld [vmem:[%s398 + $0x120] sm:$0xf]
          %v594 = vld [vmem:[%s398 + $0x124] sm:$0xf]
          %v595 = vld [vmem:[%s398 + $0x128] sm:$0xf]
          %v596 = vld [vmem:[%s398 + $0x12c] sm:$0xf]
          %v597 = vld [vmem:[%s398 + $0x130] sm:$0xf]
          %v598 = vld [vmem:[%s398 + $0x134] sm:$0xf]
          %v599 = vld [vmem:[%s398 + $0x138] sm:$0xf]
          %v600 = vld [vmem:[%s398 + $0x13c] sm:$0xf]
          %v601 = vld [vmem:[%s398 + $0x140] sm:$0xf]
          %v602 = vld [vmem:[%s398 + $0x144] sm:$0xf]
          %v603 = vld [vmem:[%s398 + $0x148] sm:$0xf]
          %v604 = vld [vmem:[%s398 + $0x14c] sm:$0xf]
          %v605 = vld [vmem:[%s398 + $0x150] sm:$0xf]
          %v606 = vld [vmem:[%s398 + $0x154] sm:$0xf]
          %v607 = vld [vmem:[%s398 + $0x158] sm:$0xf]
          %v608 = vld [vmem:[%s398 + $0x15c] sm:$0xf]
          %v609 = vld [vmem:[%s398 + $0x160] sm:$0xf]
          %v610 = vld [vmem:[%s398 + $0x164] sm:$0xf]
          %v611 = vld [vmem:[%s398 + $0x168] sm:$0xf]
          %v612 = vld [vmem:[%s398 + $0x16c] sm:$0xf]
          %v613 = vld [vmem:[%s398 + $0x170] sm:$0xf]
          %v614 = vld [vmem:[%s398 + $0x174] sm:$0xf]
          %v615 = vld [vmem:[%s398 + $0x178] sm:$0xf]
          %v616 = vld [vmem:[%s398 + $0x17c] sm:$0xf]
          %v617 = vld [vmem:[%s398 + $0x180] sm:$0xf]
          %v618 = vld [vmem:[%s398 + $0x184] sm:$0xf]
          %v619 = vld [vmem:[%s398 + $0x188] sm:$0xf]
          %v620 = vld [vmem:[%s398 + $0x18c] sm:$0xf]
          %v621 = vld [vmem:[%s398 + $0x190] sm:$0xf]
          %v622 = vld [vmem:[%s398 + $0x194] sm:$0xf]
          %v623 = vld [vmem:[%s398 + $0x198] sm:$0xf]
          %v624 = vld [vmem:[%s398 + $0x19c] sm:$0xf]
          %v625 = vld [vmem:[%s398 + $0x1a0] sm:$0xf]
          %v626 = vld [vmem:[%s398 + $0x1a4] sm:$0xf]
          %v627 = vld [vmem:[%s398 + $0x1a8] sm:$0xf]
          %v628 = vld [vmem:[%s398 + $0x1ac] sm:$0xf]
          %v629 = vld [vmem:[%s398 + $0x1b0] sm:$0xf]
          %v630 = vld [vmem:[%s398 + $0x1b4] sm:$0xf]
          %v631 = vld [vmem:[%s398 + $0x1b8] sm:$0xf]
          %v632 = vld [vmem:[%s398 + $0x1bc] sm:$0xf]
          %v633 = vld [vmem:[%s398 + $0x1c0] sm:$0xf]
          %v634 = vld [vmem:[%s398 + $0x1c4] sm:$0xf]
          %v635 = vld [vmem:[%s398 + $0x1c8] sm:$0xf]
          %v636 = vld [vmem:[%s398 + $0x1cc] sm:$0xf]
          %v637 = vld [vmem:[%s398 + $0x1d0] sm:$0xf]
          %v638 = vld [vmem:[%s398 + $0x1d4] sm:$0xf]
          %v639 = vld [vmem:[%s398 + $0x1d8] sm:$0xf]
          %v640 = vld [vmem:[%s398 + $0x1dc] sm:$0xf]
          %v641 = vld [vmem:[%s398 + $0x1e0] sm:$0xf]
          %v642 = vld [vmem:[%s398 + $0x1e4] sm:$0xf]
          %v643 = vld [vmem:[%s398 + $0x1e8] sm:$0xf]
          %v644 = vld [vmem:[%s398 + $0x1ec] sm:$0xf]
          %v645 = vld [vmem:[%s398 + $0x1f0] sm:$0xf]
          %v646 = vld [vmem:[%s398 + $0x1f4] sm:$0xf]
          %v647 = vld [vmem:[%s398 + $0x1f8] sm:$0xf]
          %v648 = vld [vmem:[%s398 + $0x1fc] sm:$0xf]
          %v777 = vunpack.c.l.b16 %v521
          %v778 = vunpack.c.l.b16 %v522
          %v779 = vunpack.c.l.b16 %v523
          %v780 = vunpack.c.l.b16 %v524
          %v781 = vunpack.c.l.b16 %v525
          %v782 = vunpack.c.l.b16 %v526
          %v783 = vunpack.c.l.b16 %v527
          %v784 = vunpack.c.l.b16 %v528
          %v785 = vunpack.c.l.b16 %v529
          %v786 = vunpack.c.l.b16 %v530
          %v787 = vunpack.c.l.b16 %v531
          %v788 = vunpack.c.l.b16 %v532
          %v789 = vunpack.c.l.b16 %v533
          %v790 = vunpack.c.l.b16 %v534
          %v791 = vunpack.c.l.b16 %v535
          %v792 = vunpack.c.l.b16 %v536
          %v793 = vunpack.c.l.b16 %v537
          %v794 = vunpack.c.l.b16 %v538
          %v795 = vunpack.c.l.b16 %v539
          %v796 = vunpack.c.l.b16 %v540
          %v797 = vunpack.c.l.b16 %v541
          %v798 = vunpack.c.l.b16 %v542
          %v799 = vunpack.c.l.b16 %v543
          %v800 = vunpack.c.l.b16 %v544
          %v801 = vunpack.c.l.b16 %v545
          %v802 = vunpack.c.l.b16 %v546
          %v803 = vunpack.c.l.b16 %v547
          %v804 = vunpack.c.l.b16 %v548
          %v805 = vunpack.c.l.b16 %v549
          %v806 = vunpack.c.l.b16 %v550
          %v807 = vunpack.c.l.b16 %v551
          %v808 = vunpack.c.l.b16 %v552
          %v809 = vunpack.c.l.b16 %v553
          %v810 = vunpack.c.l.b16 %v554
          %v811 = vunpack.c.l.b16 %v555
          %v812 = vunpack.c.l.b16 %v556
          %v813 = vunpack.c.l.b16 %v557
          %v814 = vunpack.c.l.b16 %v558
          %v815 = vunpack.c.l.b16 %v559
          %v816 = vunpack.c.l.b16 %v560
          %v817 = vunpack.c.l.b16 %v561
          %v818 = vunpack.c.l.b16 %v562
          %v819 = vunpack.c.l.b16 %v563
          %v820 = vunpack.c.l.b16 %v564
          %v821 = vunpack.c.l.b16 %v565
          %v822 = vunpack.c.l.b16 %v566
          %v823 = vunpack.c.l.b16 %v567
          %v824 = vunpack.c.l.b16 %v568
          %v825 = vunpack.c.l.b16 %v569
          %v826 = vunpack.c.l.b16 %v570
          %v827 = vunpack.c.l.b16 %v571
          %v828 = vunpack.c.l.b16 %v572
          %v829 = vunpack.c.l.b16 %v573
          %v830 = vunpack.c.l.b16 %v574
          %v831 = vunpack.c.l.b16 %v575
          %v832 = vunpack.c.l.b16 %v576
          %v833 = vunpack.c.l.b16 %v577
          %v834 = vunpack.c.l.b16 %v578
          %v835 = vunpack.c.l.b16 %v579
          %v836 = vunpack.c.l.b16 %v580
          %v837 = vunpack.c.l.b16 %v581
          %v838 = vunpack.c.l.b16 %v582
          %v839 = vunpack.c.l.b16 %v583
          %v840 = vunpack.c.l.b16 %v584
          %v841 = vunpack.c.l.b16 %v585
          %v842 = vunpack.c.l.b16 %v586
          %v843 = vunpack.c.l.b16 %v587
          %v844 = vunpack.c.l.b16 %v588
          %v845 = vunpack.c.l.b16 %v589
          %v846 = vunpack.c.l.b16 %v590
          %v847 = vunpack.c.l.b16 %v591
          %v848 = vunpack.c.l.b16 %v592
          %v849 = vunpack.c.l.b16 %v593
          %v850 = vunpack.c.l.b16 %v594
          %v851 = vunpack.c.l.b16 %v595
          %v852 = vunpack.c.l.b16 %v596
          %v853 = vunpack.c.l.b16 %v597
          %v854 = vunpack.c.l.b16 %v598
          %v855 = vunpack.c.l.b16 %v599
          %v856 = vunpack.c.l.b16 %v600
          %v857 = vunpack.c.l.b16 %v601
          %v858 = vunpack.c.l.b16 %v602
          %v859 = vunpack.c.l.b16 %v603
          %v860 = vunpack.c.l.b16 %v604
          %v861 = vunpack.c.l.b16 %v605
          %v862 = vunpack.c.l.b16 %v606
          %v863 = vunpack.c.l.b16 %v607
          %v864 = vunpack.c.l.b16 %v608
          %v865 = vunpack.c.l.b16 %v609
          %v866 = vunpack.c.l.b16 %v610
          %v867 = vunpack.c.l.b16 %v611
          %v868 = vunpack.c.l.b16 %v612
          %v869 = vunpack.c.l.b16 %v613
          %v870 = vunpack.c.l.b16 %v614
          %v871 = vunpack.c.l.b16 %v615
          %v872 = vunpack.c.l.b16 %v616
          %v873 = vunpack.c.l.b16 %v617
          %v874 = vunpack.c.l.b16 %v618
          %v875 = vunpack.c.l.b16 %v619
          %v876 = vunpack.c.l.b16 %v620
          %v877 = vunpack.c.l.b16 %v621
          %v878 = vunpack.c.l.b16 %v622
          %v879 = vunpack.c.l.b16 %v623
          %v880 = vunpack.c.l.b16 %v624
          %v881 = vunpack.c.l.b16 %v625
          %v882 = vunpack.c.l.b16 %v626
          %v883 = vunpack.c.l.b16 %v627
          %v884 = vunpack.c.l.b16 %v628
          %v885 = vunpack.c.l.b16 %v629
          %v886 = vunpack.c.l.b16 %v630
          %v887 = vunpack.c.l.b16 %v631
          %v888 = vunpack.c.l.b16 %v632
          %v889 = vunpack.c.l.b16 %v633
          %v890 = vunpack.c.l.b16 %v634
          %v891 = vunpack.c.l.b16 %v635
          %v892 = vunpack.c.l.b16 %v636
          %v893 = vunpack.c.l.b16 %v637
          %v894 = vunpack.c.l.b16 %v638
          %v895 = vunpack.c.l.b16 %v639
          %v896 = vunpack.c.l.b16 %v640
          %v897 = vunpack.c.l.b16 %v641
          %v898 = vunpack.c.l.b16 %v642
          %v899 = vunpack.c.l.b16 %v643
          %v900 = vunpack.c.l.b16 %v644
          %v901 = vunpack.c.l.b16 %v645
          %v902 = vunpack.c.l.b16 %v646
          %v903 = vunpack.c.l.b16 %v647
          %v904 = vunpack.c.l.b16 %v648
          %v905 = vpack.c.b16 %v778, %v777
          %v906 = vpack.c.b16 %v780, %v779
          %v907 = vpack.c.b16 %v782, %v781
          %v908 = vpack.c.b16 %v784, %v783
          %v909 = vpack.c.b16 %v786, %v785
          %v910 = vpack.c.b16 %v788, %v787
          %v911 = vpack.c.b16 %v790, %v789
          %v912 = vpack.c.b16 %v792, %v791
          %v913 = vpack.c.b16 %v794, %v793
          %v914 = vpack.c.b16 %v796, %v795
          %v915 = vpack.c.b16 %v798, %v797
          %v916 = vpack.c.b16 %v800, %v799
          %v917 = vpack.c.b16 %v802, %v801
          %v918 = vpack.c.b16 %v804, %v803
          %v919 = vpack.c.b16 %v806, %v805
          %v920 = vpack.c.b16 %v808, %v807
          %v921 = vpack.c.b16 %v810, %v809
          %v922 = vpack.c.b16 %v812, %v811
          %v923 = vpack.c.b16 %v814, %v813
          %v924 = vpack.c.b16 %v816, %v815
          %v925 = vpack.c.b16 %v818, %v817
          %v926 = vpack.c.b16 %v820, %v819
          %v927 = vpack.c.b16 %v822, %v821
          %v928 = vpack.c.b16 %v824, %v823
          %v929 = vpack.c.b16 %v826, %v825
          %v930 = vpack.c.b16 %v828, %v827
          %v931 = vpack.c.b16 %v830, %v829
          %v932 = vpack.c.b16 %v832, %v831
          %v933 = vpack.c.b16 %v834, %v833
          %v934 = vpack.c.b16 %v836, %v835
          %v935 = vpack.c.b16 %v838, %v837
          %v936 = vpack.c.b16 %v840, %v839
          %v937 = vpack.c.b16 %v842, %v841
          %v938 = vpack.c.b16 %v844, %v843
          %v939 = vpack.c.b16 %v846, %v845
          %v940 = vpack.c.b16 %v848, %v847
          %v941 = vpack.c.b16 %v850, %v849
          %v942 = vpack.c.b16 %v852, %v851
          %v943 = vpack.c.b16 %v854, %v853
          %v944 = vpack.c.b16 %v856, %v855
          %v945 = vpack.c.b16 %v858, %v857
          %v946 = vpack.c.b16 %v860, %v859
          %v947 = vpack.c.b16 %v862, %v861
          %v948 = vpack.c.b16 %v864, %v863
          %v949 = vpack.c.b16 %v866, %v865
          %v950 = vpack.c.b16 %v868, %v867
          %v951 = vpack.c.b16 %v870, %v869
          %v952 = vpack.c.b16 %v872, %v871
          %v953 = vpack.c.b16 %v874, %v873
          %v954 = vpack.c.b16 %v876, %v875
          %v955 = vpack.c.b16 %v878, %v877
          %v956 = vpack.c.b16 %v880, %v879
          %v957 = vpack.c.b16 %v882, %v881
          %v958 = vpack.c.b16 %v884, %v883
          %v959 = vpack.c.b16 %v886, %v885
          %v960 = vpack.c.b16 %v888, %v887
          %v961 = vpack.c.b16 %v890, %v889
          %v962 = vpack.c.b16 %v892, %v891
          %v963 = vpack.c.b16 %v894, %v893
          %v964 = vpack.c.b16 %v896, %v895
          %v965 = vpack.c.b16 %v898, %v897
          %v966 = vpack.c.b16 %v900, %v899
          %v967 = vpack.c.b16 %v902, %v901
          %v968 = vpack.c.b16 %v904, %v903
          %1033 = vmatprep.subr.bf16.mxu0 0
          %1034 = vmatpush1.bf16.msra.mxu0 %v912
          %1035 = vmatprep.subr.bf16.mxu0 0
          %1036 = vmatpush1.bf16.msra.mxu0 %v911
          %1037 = vmatprep.subr.bf16.mxu0 0
          %1038 = vmatpush1.bf16.msra.mxu0 %v910
          %1039 = vmatprep.subr.bf16.mxu0 0
          %1040 = vmatpush1.bf16.msra.mxu0 %v909
          %1041 = vmatprep.subr.bf16.mxu0 0
          %1042 = vmatpush1.bf16.msra.mxu0 %v908
          %1043 = vmatprep.subr.bf16.mxu0 0
          %1044 = vmatpush1.bf16.msra.mxu0 %v907
          %1045 = vmatprep.subr.bf16.mxu0 0
          %1046 = vmatpush1.bf16.msra.mxu0 %v906
          %1047 = vmatprep.subr.bf16.mxu0 0
          %1048 = vmatpush1.bf16.msra.mxu0 %v905
          %1049 = vmatprep.subr.bf16.mxu0 0
          %1050 = vmatpush2.bf16.msra.mxu0 %v920
          %1051 = vmatprep.subr.bf16.mxu0 0
          %1052 = vmatpush2.bf16.msra.mxu0 %v919
          %1053 = vmatprep.subr.bf16.mxu0 0
          %1054 = vmatpush2.bf16.msra.mxu0 %v918
          %1055 = vmatprep.subr.bf16.mxu0 0
          %1056 = vmatpush2.bf16.msra.mxu0 %v917
          %1057 = vmatprep.subr.bf16.mxu0 0
          %1058 = vmatpush2.bf16.msra.mxu0 %v916
          %1059 = vmatprep.subr.bf16.mxu0 0
          %1060 = vmatpush2.bf16.msra.mxu0 %v915
          %1061 = vmatprep.subr.bf16.mxu0 0
          %1062 = vmatpush2.bf16.msra.mxu0 %v914
          %1063 = vmatprep.subr.bf16.mxu0 0
          %1064 = vmatpush2.bf16.msra.mxu0 %v913
          %1065 = vmatprep.mubr.bf16.mxu0 %v514
          %1066 = vmatmul.mubr.bf16.gmra.mxu0 %v513
          %v1067 = vpop.f32.mrf.mxu0
          %v1068 = vadd.f32 0.0, %v1067
          %v1069 = vpop.f32.mrf.mxu0
          %v1070 = vpop.f32.mrf.mxu0
          %v1071 = vpop.f32.mrf.mxu0
          %1072 = vdwg.mxu0
          %1073 = vmatprep.subr.bf16.mxu0 0
          %1074 = vmatpush1.bf16.msra.mxu0 %v928
          %1075 = vmatprep.subr.bf16.mxu0 0
          %1076 = vmatpush1.bf16.msra.mxu0 %v927
          %1077 = vmatprep.subr.bf16.mxu0 0
          %1078 = vmatpush1.bf16.msra.mxu0 %v926
          %1079 = vmatprep.subr.bf16.mxu0 0
          %1080 = vmatpush1.bf16.msra.mxu0 %v925
          %1081 = vmatprep.subr.bf16.mxu0 0
          %1082 = vmatpush1.bf16.msra.mxu0 %v924
          %1083 = vmatprep.subr.bf16.mxu0 0
          %1084 = vmatpush1.bf16.msra.mxu0 %v923
          %1085 = vmatprep.subr.bf16.mxu0 0
          %1086 = vmatpush1.bf16.msra.mxu0 %v922
          %1087 = vmatprep.subr.bf16.mxu0 0
          %1088 = vmatpush1.bf16.msra.mxu0 %v921
          %1089 = vmatprep.subr.bf16.mxu0 0
          %1090 = vmatpush2.bf16.msra.mxu0 %v936
          %1091 = vmatprep.subr.bf16.mxu0 0
          %1092 = vmatpush2.bf16.msra.mxu0 %v935
          %1093 = vmatprep.subr.bf16.mxu0 0
          %1094 = vmatpush2.bf16.msra.mxu0 %v934
          %1095 = vmatprep.subr.bf16.mxu0 0
          %1096 = vmatpush2.bf16.msra.mxu0 %v933
          %1097 = vmatprep.subr.bf16.mxu0 0
          %1098 = vmatpush2.bf16.msra.mxu0 %v932
          %1099 = vmatprep.subr.bf16.mxu0 0
          %1100 = vmatpush2.bf16.msra.mxu0 %v931
          %1101 = vmatprep.subr.bf16.mxu0 0
          %1102 = vmatpush2.bf16.msra.mxu0 %v930
          %1103 = vmatprep.subr.bf16.mxu0 0
          %1104 = vmatpush2.bf16.msra.mxu0 %v929
          %1105 = vmatprep.mubr.bf16.mxu0 %v516
          %1106 = vmatmul.mubr.bf16.gmra.mxu0 %v515
          %v1107 = vpop.f32.mrf.mxu0
          %v1108 = vadd.f32 %v1068, %v1107
          %v1109 = vpop.f32.mrf.mxu0
          %v1110 = vpop.f32.mrf.mxu0
          %v1111 = vpop.f32.mrf.mxu0
          %1112 = vdwg.mxu0
          %1113 = vmatprep.subr.bf16.mxu0 0
          %1114 = vmatpush1.bf16.msra.mxu0 %v944
          %1115 = vmatprep.subr.bf16.mxu0 0
          %1116 = vmatpush1.bf16.msra.mxu0 %v943
          %1117 = vmatprep.subr.bf16.mxu0 0
          %1118 = vmatpush1.bf16.msra.mxu0 %v942
          %1119 = vmatprep.subr.bf16.mxu0 0
          %1120 = vmatpush1.bf16.msra.mxu0 %v941
          %1121 = vmatprep.subr.bf16.mxu0 0
          %1122 = vmatpush1.bf16.msra.mxu0 %v940
          %1123 = vmatprep.subr.bf16.mxu0 0
          %1124 = vmatpush1.bf16.msra.mxu0 %v939
          %1125 = vmatprep.subr.bf16.mxu0 0
          %1126 = vmatpush1.bf16.msra.mxu0 %v938
          %1127 = vmatprep.subr.bf16.mxu0 0
          %1128 = vmatpush1.bf16.msra.mxu0 %v937
          %1129 = vmatprep.subr.bf16.mxu0 0
          %1130 = vmatpush2.bf16.msra.mxu0 %v952
          %1131 = vmatprep.subr.bf16.mxu0 0
          %1132 = vmatpush2.bf16.msra.mxu0 %v951
          %1133 = vmatprep.subr.bf16.mxu0 0
          %1134 = vmatpush2.bf16.msra.mxu0 %v950
          %1135 = vmatprep.subr.bf16.mxu0 0
          %1136 = vmatpush2.bf16.msra.mxu0 %v949
          %1137 = vmatprep.subr.bf16.mxu0 0
          %1138 = vmatpush2.bf16.msra.mxu0 %v948
          %1139 = vmatprep.subr.bf16.mxu0 0
          %1140 = vmatpush2.bf16.msra.mxu0 %v947
          %1141 = vmatprep.subr.bf16.mxu0 0
          %1142 = vmatpush2.bf16.msra.mxu0 %v946
          %1143 = vmatprep.subr.bf16.mxu0 0
          %1144 = vmatpush2.bf16.msra.mxu0 %v945
          %1145 = vmatprep.mubr.bf16.mxu0 %v518
          %1146 = vmatmul.mubr.bf16.gmra.mxu0 %v517
          %v1147 = vpop.f32.mrf.mxu0
          %v1148 = vadd.f32 %v1108, %v1147
          %v1149 = vpop.f32.mrf.mxu0
          %v1150 = vpop.f32.mrf.mxu0
          %v1151 = vpop.f32.mrf.mxu0
          %1152 = vdwg.mxu0
          %1153 = vmatprep.subr.bf16.mxu0 0
          %1154 = vmatpush1.bf16.msra.mxu0 %v960
          %1155 = vmatprep.subr.bf16.mxu0 0
          %1156 = vmatpush1.bf16.msra.mxu0 %v959
          %1157 = vmatprep.subr.bf16.mxu0 0
          %1158 = vmatpush1.bf16.msra.mxu0 %v958
          %1159 = vmatprep.subr.bf16.mxu0 0
          %1160 = vmatpush1.bf16.msra.mxu0 %v957
          %1161 = vmatprep.subr.bf16.mxu0 0
          %1162 = vmatpush1.bf16.msra.mxu0 %v956
          %1163 = vmatprep.subr.bf16.mxu0 0
          %1164 = vmatpush1.bf16.msra.mxu0 %v955
          %1165 = vmatprep.subr.bf16.mxu0 0
          %1166 = vmatpush1.bf16.msra.mxu0 %v954
          %1167 = vmatprep.subr.bf16.mxu0 0
          %1168 = vmatpush1.bf16.msra.mxu0 %v953
          %1169 = vmatprep.subr.bf16.mxu0 0
          %1170 = vmatpush2.bf16.msra.mxu0 %v968
          %1171 = vmatprep.subr.bf16.mxu0 0
          %1172 = vmatpush2.bf16.msra.mxu0 %v967
          %1173 = vmatprep.subr.bf16.mxu0 0
          %1174 = vmatpush2.bf16.msra.mxu0 %v966
          %1175 = vmatprep.subr.bf16.mxu0 0
          %1176 = vmatpush2.bf16.msra.mxu0 %v965
          %1177 = vmatprep.subr.bf16.mxu0 0
          %1178 = vmatpush2.bf16.msra.mxu0 %v964
          %1179 = vmatprep.subr.bf16.mxu0 0
          %1180 = vmatpush2.bf16.msra.mxu0 %v963
          %1181 = vmatprep.subr.bf16.mxu0 0
          %1182 = vmatpush2.bf16.msra.mxu0 %v962
          %1183 = vmatprep.subr.bf16.mxu0 0
          %1184 = vmatpush2.bf16.msra.mxu0 %v961
          %1185 = vmatprep.mubr.bf16.mxu0 %v520
          %1186 = vmatmul.mubr.bf16.gmra.mxu0 %v519
          %v1187 = vpop.f32.mrf.mxu0
          %v1188 = vadd.f32 %v1148, %v1187
          %v1189 = vpop.f32.mrf.mxu0
          %v1190 = vpop.f32.mrf.mxu0
          %v1191 = vpop.f32.mrf.mxu0
          %1192 = vdwg.mxu0
          %v1193 = vadd.f32 %v504, %v1188
          %1194 = vst [vmem:[%s7] sm:$0xff] %v1193
          // Predicated region
          $region65: #{generator_forward.1} parent=59 // pred_check
            %p1195 = pneg %p499
          $region66: #{generator_forward.1} parent=59 // pred_check_branch
            %1197 = sbr.rel (%p1195) target = $region68
          $region67: #{generator_forward.1} parent=59 // pred_region
            %v1198 = vld [vmem:[%s7] sm:$0xff]
            %v1199 = vld [vmem:[%s3] sm:$0x1]
            %v1201 = vlaneseq
            %v1202 = vshrl.u32 %v1201, 7
            %v1203 = vsub.s32 0, %v1202
            %v1204 = vrot.slane %v1199, %v1203
            %v1206 = vadd.f32 %v1198, %v1204
            %v1207 = vmax.f32 %v1206, 0.0
            %v1208 = vld [vmem:[%s4] sm:$0xff]
            %s1209 = sld [smem:[#allocation3]]
            %v1210 = vstv %s1209
            %v1211 = vmul.f32 %v1208, %v1210
            %v1212 = vadd.f32 %v1207, %v1211
            %1213 = vst [vmem:[%s7] sm:$0xff] %v1207
            %1214 = vst [vmem:[%s8] sm:$0xff] %v1212
            %v1215 = vpack.c.bf16 %v1212, %v1212
            %1216 = vst [vmem:[#allocation2] sm:$0xf] %v1215
          $region68: #{generator_forward.1} parent=59 // pred_fallthru
            _
        $region60: #{generator_forward.1} parent=47 // pred_fallthru
          _
        %p1217 = scmp.eq.s32.totalorder %s32, 1
        // Predicated region
        $region69: #{generator_forward.1} parent=47 // pred_check
          %p1218 = pneg %p1217
        $region70: #{generator_forward.1} parent=47 // pred_check_branch
          %1220 = sbr.rel (%p1218) target = $region72
        $region71: #{generator_forward.1} parent=47 // pred_region
          %v1221 = vld [vmem:[#allocation2] sm:$0xf]
          %v1222 = vld [vmem:[%s407] sm:$0xff]
          %v1223 = vld [vmem:[%s407 + $0x8] sm:$0xff]
          %v1224 = vld [vmem:[%s407 + $0x10] sm:$0xff]
          %v1225 = vld [vmem:[%s407 + $0x18] sm:$0xff]
          %v1226 = vld [vmem:[%s407 + $0x20] sm:$0xff]
          %v1227 = vld [vmem:[%s407 + $0x28] sm:$0xff]
          %v1228 = vld [vmem:[%s407 + $0x30] sm:$0xff]
          %v1229 = vld [vmem:[%s407 + $0x38] sm:$0xff]
          %v1230 = vld [vmem:[%s407 + $0x40] sm:$0xff]
          %v1231 = vld [vmem:[%s407 + $0x48] sm:$0xff]
          %v1232 = vld [vmem:[%s407 + $0x50] sm:$0xff]
          %v1233 = vld [vmem:[%s407 + $0x58] sm:$0xff]
          %v1234 = vld [vmem:[%s407 + $0x60] sm:$0xff]
          %v1235 = vld [vmem:[%s407 + $0x68] sm:$0xff]
          %v1236 = vld [vmem:[%s407 + $0x70] sm:$0xff]
          %v1237 = vld [vmem:[%s407 + $0x78] sm:$0xff]
          %v1238 = vld [vmem:[%s407 + $0x80] sm:$0xff]
          %v1239 = vld [vmem:[%s407 + $0x88] sm:$0xff]
          %v1240 = vld [vmem:[%s407 + $0x90] sm:$0xff]
          %v1241 = vld [vmem:[%s407 + $0x98] sm:$0xff]
          %v1242 = vld [vmem:[%s407 + $0xa0] sm:$0xff]
          %v1243 = vld [vmem:[%s407 + $0xa8] sm:$0xff]
          %v1244 = vld [vmem:[%s407 + $0xb0] sm:$0xff]
          %v1245 = vld [vmem:[%s407 + $0xb8] sm:$0xff]
          %v1246 = vld [vmem:[%s407 + $0xc0] sm:$0xff]
          %v1247 = vld [vmem:[%s407 + $0xc8] sm:$0xff]
          %v1248 = vld [vmem:[%s407 + $0xd0] sm:$0xff]
          %v1249 = vld [vmem:[%s407 + $0xd8] sm:$0xff]
          %v1250 = vld [vmem:[%s407 + $0xe0] sm:$0xff]
          %v1251 = vld [vmem:[%s407 + $0xe8] sm:$0xff]
          %v1252 = vld [vmem:[%s407 + $0xf0] sm:$0xff]
          %v1253 = vld [vmem:[%s407 + $0xf8] sm:$0xff]
          %v1254 = vld [vmem:[%s407 + $0x100] sm:$0xff]
          %v1255 = vld [vmem:[%s407 + $0x108] sm:$0xff]
          %v1256 = vld [vmem:[%s407 + $0x110] sm:$0xff]
          %v1257 = vld [vmem:[%s407 + $0x118] sm:$0xff]
          %v1258 = vld [vmem:[%s407 + $0x120] sm:$0xff]
          %v1259 = vld [vmem:[%s407 + $0x128] sm:$0xff]
          %v1260 = vld [vmem:[%s407 + $0x130] sm:$0xff]
          %v1261 = vld [vmem:[%s407 + $0x138] sm:$0xff]
          %v1262 = vld [vmem:[%s407 + $0x140] sm:$0xff]
          %v1263 = vld [vmem:[%s407 + $0x148] sm:$0xff]
          %v1264 = vld [vmem:[%s407 + $0x150] sm:$0xff]
          %v1265 = vld [vmem:[%s407 + $0x158] sm:$0xff]
          %v1266 = vld [vmem:[%s407 + $0x160] sm:$0xff]
          %v1267 = vld [vmem:[%s407 + $0x168] sm:$0xff]
          %v1268 = vld [vmem:[%s407 + $0x170] sm:$0xff]
          %v1269 = vld [vmem:[%s407 + $0x178] sm:$0xff]
          %v1270 = vld [vmem:[%s407 + $0x180] sm:$0xff]
          %v1271 = vld [vmem:[%s407 + $0x188] sm:$0xff]
          %v1272 = vld [vmem:[%s407 + $0x190] sm:$0xff]
          %v1273 = vld [vmem:[%s407 + $0x198] sm:$0xff]
          %v1274 = vld [vmem:[%s407 + $0x1a0] sm:$0xff]
          %v1275 = vld [vmem:[%s407 + $0x1a8] sm:$0xff]
          %v1276 = vld [vmem:[%s407 + $0x1b0] sm:$0xff]
          %v1277 = vld [vmem:[%s407 + $0x1b8] sm:$0xff]
          %v1278 = vld [vmem:[%s407 + $0x1c0] sm:$0xff]
          %v1279 = vld [vmem:[%s407 + $0x1c8] sm:$0xff]
          %v1280 = vld [vmem:[%s407 + $0x1d0] sm:$0xff]
          %v1281 = vld [vmem:[%s407 + $0x1d8] sm:$0xff]
          %v1282 = vld [vmem:[%s407 + $0x1e0] sm:$0xff]
          %v1283 = vld [vmem:[%s407 + $0x1e8] sm:$0xff]
          %v1284 = vld [vmem:[%s407 + $0x1f0] sm:$0xff]
          %v1285 = vld [vmem:[%s407 + $0x1f8] sm:$0xff]
          %v1286 = vld [vmem:[%s483] sm:$0xff]
          %v1288 = vlaneseq
          %v1289 = vshrl.u32 %v1288, 7
          %v1290 = vsub.s32 0, %v1289
          %v1291 = vrot.slane %v1286, %v1290
          %v1292 = vlaneseq
          %v1293 = vshrl.u32 %v1292, 7
          %v1294 = vsub.s32 1, %v1293
          %v1295 = vrot.slane %v1286, %v1294
          %v1296 = vlaneseq
          %v1297 = vshrl.u32 %v1296, 7
          %v1298 = vsub.s32 2, %v1297
          %v1299 = vrot.slane %v1286, %v1298
          %v1300 = vlaneseq
          %v1301 = vshrl.u32 %v1300, 7
          %v1302 = vsub.s32 3, %v1301
          %v1303 = vrot.slane %v1286, %v1302
          %v1304 = vlaneseq
          %v1305 = vshrl.u32 %v1304, 7
          %v1306 = vsub.s32 4, %v1305
          %v1307 = vrot.slane %v1286, %v1306
          %v1308 = vlaneseq
          %v1309 = vshrl.u32 %v1308, 7
          %v1310 = vsub.s32 5, %v1309
          %v1311 = vrot.slane %v1286, %v1310
          %v1312 = vlaneseq
          %v1313 = vshrl.u32 %v1312, 7
          %v1314 = vsub.s32 6, %v1313
          %v1315 = vrot.slane %v1286, %v1314
          %v1316 = vlaneseq
          %v1317 = vshrl.u32 %v1316, 7
          %v1318 = vsub.s32 7, %v1317
          %v1319 = vrot.slane %v1286, %v1318
          %v1392 = vunpack.c.l.b16 %v1222
          %v1393 = vunpack.c.h.b16 %v1222
          %v1394 = vunpack.c.l.b16 %v1223
          %v1395 = vunpack.c.h.b16 %v1223
          %v1396 = vunpack.c.l.b16 %v1224
          %v1397 = vunpack.c.h.b16 %v1224
          %v1398 = vunpack.c.l.b16 %v1225
          %v1399 = vunpack.c.h.b16 %v1225
          %v1400 = vunpack.c.l.b16 %v1226
          %v1401 = vunpack.c.h.b16 %v1226
          %v1402 = vunpack.c.l.b16 %v1227
          %v1403 = vunpack.c.h.b16 %v1227
          %v1404 = vunpack.c.l.b16 %v1228
          %v1405 = vunpack.c.h.b16 %v1228
          %v1406 = vunpack.c.l.b16 %v1229
          %v1407 = vunpack.c.h.b16 %v1229
          %v1408 = vunpack.c.l.b16 %v1230
          %v1409 = vunpack.c.h.b16 %v1230
          %v1410 = vunpack.c.l.b16 %v1231
          %v1411 = vunpack.c.h.b16 %v1231
          %v1412 = vunpack.c.l.b16 %v1232
          %v1413 = vunpack.c.h.b16 %v1232
          %v1414 = vunpack.c.l.b16 %v1233
          %v1415 = vunpack.c.h.b16 %v1233
          %v1416 = vunpack.c.l.b16 %v1234
          %v1417 = vunpack.c.h.b16 %v1234
          %v1418 = vunpack.c.l.b16 %v1235
          %v1419 = vunpack.c.h.b16 %v1235
          %v1420 = vunpack.c.l.b16 %v1236
          %v1421 = vunpack.c.h.b16 %v1236
          %v1422 = vunpack.c.l.b16 %v1237
          %v1423 = vunpack.c.h.b16 %v1237
          %v1424 = vunpack.c.l.b16 %v1238
          %v1425 = vunpack.c.h.b16 %v1238
          %v1426 = vunpack.c.l.b16 %v1239
          %v1427 = vunpack.c.h.b16 %v1239
          %v1428 = vunpack.c.l.b16 %v1240
          %v1429 = vunpack.c.h.b16 %v1240
          %v1430 = vunpack.c.l.b16 %v1241
          %v1431 = vunpack.c.h.b16 %v1241
          %v1432 = vunpack.c.l.b16 %v1242
          %v1433 = vunpack.c.h.b16 %v1242
          %v1434 = vunpack.c.l.b16 %v1243
          %v1435 = vunpack.c.h.b16 %v1243
          %v1436 = vunpack.c.l.b16 %v1244
          %v1437 = vunpack.c.h.b16 %v1244
          %v1438 = vunpack.c.l.b16 %v1245
          %v1439 = vunpack.c.h.b16 %v1245
          %v1440 = vunpack.c.l.b16 %v1246
          %v1441 = vunpack.c.h.b16 %v1246
          %v1442 = vunpack.c.l.b16 %v1247
          %v1443 = vunpack.c.h.b16 %v1247
          %v1444 = vunpack.c.l.b16 %v1248
          %v1445 = vunpack.c.h.b16 %v1248
          %v1446 = vunpack.c.l.b16 %v1249
          %v1447 = vunpack.c.h.b16 %v1249
          %v1448 = vunpack.c.l.b16 %v1250
          %v1449 = vunpack.c.h.b16 %v1250
          %v1450 = vunpack.c.l.b16 %v1251
          %v1451 = vunpack.c.h.b16 %v1251
          %v1452 = vunpack.c.l.b16 %v1252
          %v1453 = vunpack.c.h.b16 %v1252
          %v1454 = vunpack.c.l.b16 %v1253
          %v1455 = vunpack.c.h.b16 %v1253
          %v1456 = vunpack.c.l.b16 %v1254
          %v1457 = vunpack.c.h.b16 %v1254
          %v1458 = vunpack.c.l.b16 %v1255
          %v1459 = vunpack.c.h.b16 %v1255
          %v1460 = vunpack.c.l.b16 %v1256
          %v1461 = vunpack.c.h.b16 %v1256
          %v1462 = vunpack.c.l.b16 %v1257
          %v1463 = vunpack.c.h.b16 %v1257
          %v1464 = vunpack.c.l.b16 %v1258
          %v1465 = vunpack.c.h.b16 %v1258
          %v1466 = vunpack.c.l.b16 %v1259
          %v1467 = vunpack.c.h.b16 %v1259
          %v1468 = vunpack.c.l.b16 %v1260
          %v1469 = vunpack.c.h.b16 %v1260
          %v1470 = vunpack.c.l.b16 %v1261
          %v1471 = vunpack.c.h.b16 %v1261
          %v1472 = vunpack.c.l.b16 %v1262
          %v1473 = vunpack.c.h.b16 %v1262
          %v1474 = vunpack.c.l.b16 %v1263
          %v1475 = vunpack.c.h.b16 %v1263
          %v1476 = vunpack.c.l.b16 %v1264
          %v1477 = vunpack.c.h.b16 %v1264
          %v1478 = vunpack.c.l.b16 %v1265
          %v1479 = vunpack.c.h.b16 %v1265
          %v1480 = vunpack.c.l.b16 %v1266
          %v1481 = vunpack.c.h.b16 %v1266
          %v1482 = vunpack.c.l.b16 %v1267
          %v1483 = vunpack.c.h.b16 %v1267
          %v1484 = vunpack.c.l.b16 %v1268
          %v1485 = vunpack.c.h.b16 %v1268
          %v1486 = vunpack.c.l.b16 %v1269
          %v1487 = vunpack.c.h.b16 %v1269
          %v1488 = vunpack.c.l.b16 %v1270
          %v1489 = vunpack.c.h.b16 %v1270
          %v1490 = vunpack.c.l.b16 %v1271
          %v1491 = vunpack.c.h.b16 %v1271
          %v1492 = vunpack.c.l.b16 %v1272
          %v1493 = vunpack.c.h.b16 %v1272
          %v1494 = vunpack.c.l.b16 %v1273
          %v1495 = vunpack.c.h.b16 %v1273
          %v1496 = vunpack.c.l.b16 %v1274
          %v1497 = vunpack.c.h.b16 %v1274
          %v1498 = vunpack.c.l.b16 %v1275
          %v1499 = vunpack.c.h.b16 %v1275
          %v1500 = vunpack.c.l.b16 %v1276
          %v1501 = vunpack.c.h.b16 %v1276
          %v1502 = vunpack.c.l.b16 %v1277
          %v1503 = vunpack.c.h.b16 %v1277
          %v1504 = vunpack.c.l.b16 %v1278
          %v1505 = vunpack.c.h.b16 %v1278
          %v1506 = vunpack.c.l.b16 %v1279
          %v1507 = vunpack.c.h.b16 %v1279
          %v1508 = vunpack.c.l.b16 %v1280
          %v1509 = vunpack.c.h.b16 %v1280
          %v1510 = vunpack.c.l.b16 %v1281
          %v1511 = vunpack.c.h.b16 %v1281
          %v1512 = vunpack.c.l.b16 %v1282
          %v1513 = vunpack.c.h.b16 %v1282
          %v1514 = vunpack.c.l.b16 %v1283
          %v1515 = vunpack.c.h.b16 %v1283
          %v1516 = vunpack.c.l.b16 %v1284
          %v1517 = vunpack.c.h.b16 %v1284
          %v1518 = vunpack.c.l.b16 %v1285
          %v1519 = vunpack.c.h.b16 %v1285
          %v1520 = vpack.c.b16 %v1400, %v1392
          %v1521 = vpack.c.b16 %v1401, %v1393
          %v1522 = vpack.c.b16 %v1402, %v1394
          %v1523 = vpack.c.b16 %v1403, %v1395
          %v1524 = vpack.c.b16 %v1404, %v1396
          %v1525 = vpack.c.b16 %v1405, %v1397
          %v1526 = vpack.c.b16 %v1406, %v1398
          %v1527 = vpack.c.b16 %v1407, %v1399
          %v1528 = vpack.c.b16 %v1416, %v1408
          %v1529 = vpack.c.b16 %v1417, %v1409
          %v1530 = vpack.c.b16 %v1418, %v1410
          %v1531 = vpack.c.b16 %v1419, %v1411
          %v1532 = vpack.c.b16 %v1420, %v1412
          %v1533 = vpack.c.b16 %v1421, %v1413
          %v1534 = vpack.c.b16 %v1422, %v1414
          %v1535 = vpack.c.b16 %v1423, %v1415
          %v1536 = vpack.c.b16 %v1432, %v1424
          %v1537 = vpack.c.b16 %v1433, %v1425
          %v1538 = vpack.c.b16 %v1434, %v1426
          %v1539 = vpack.c.b16 %v1435, %v1427
          %v1540 = vpack.c.b16 %v1436, %v1428
          %v1541 = vpack.c.b16 %v1437, %v1429
          %v1542 = vpack.c.b16 %v1438, %v1430
          %v1543 = vpack.c.b16 %v1439, %v1431
          %v1544 = vpack.c.b16 %v1448, %v1440
          %v1545 = vpack.c.b16 %v1449, %v1441
          %v1546 = vpack.c.b16 %v1450, %v1442
          %v1547 = vpack.c.b16 %v1451, %v1443
          %v1548 = vpack.c.b16 %v1452, %v1444
          %v1549 = vpack.c.b16 %v1453, %v1445
          %v1550 = vpack.c.b16 %v1454, %v1446
          %v1551 = vpack.c.b16 %v1455, %v1447
          %v1552 = vpack.c.b16 %v1464, %v1456
          %v1553 = vpack.c.b16 %v1465, %v1457
          %v1554 = vpack.c.b16 %v1466, %v1458
          %v1555 = vpack.c.b16 %v1467, %v1459
          %v1556 = vpack.c.b16 %v1468, %v1460
          %v1557 = vpack.c.b16 %v1469, %v1461
          %v1558 = vpack.c.b16 %v1470, %v1462
          %v1559 = vpack.c.b16 %v1471, %v1463
          %v1560 = vpack.c.b16 %v1480, %v1472
          %v1561 = vpack.c.b16 %v1481, %v1473
          %v1562 = vpack.c.b16 %v1482, %v1474
          %v1563 = vpack.c.b16 %v1483, %v1475
          %v1564 = vpack.c.b16 %v1484, %v1476
          %v1565 = vpack.c.b16 %v1485, %v1477
          %v1566 = vpack.c.b16 %v1486, %v1478
          %v1567 = vpack.c.b16 %v1487, %v1479
          %v1568 = vpack.c.b16 %v1496, %v1488
          %v1569 = vpack.c.b16 %v1497, %v1489
          %v1570 = vpack.c.b16 %v1498, %v1490
          %v1571 = vpack.c.b16 %v1499, %v1491
          %v1572 = vpack.c.b16 %v1500, %v1492
          %v1573 = vpack.c.b16 %v1501, %v1493
          %v1574 = vpack.c.b16 %v1502, %v1494
          %v1575 = vpack.c.b16 %v1503, %v1495
          %v1576 = vpack.c.b16 %v1512, %v1504
          %v1577 = vpack.c.b16 %v1513, %v1505
          %v1578 = vpack.c.b16 %v1514, %v1506
          %v1579 = vpack.c.b16 %v1515, %v1507
          %v1580 = vpack.c.b16 %v1516, %v1508
          %v1581 = vpack.c.b16 %v1517, %v1509
          %v1582 = vpack.c.b16 %v1518, %v1510
          %v1583 = vpack.c.b16 %v1519, %v1511
          %1648 = vmatprep.subr.bf16.mxu0 %v1577
          %1649 = vmatpush1.bf16.msra.mxu0 %v1576
          %1650 = vmatprep.subr.bf16.mxu0 %v1569
          %1651 = vmatpush1.bf16.msra.mxu0 %v1568
          %1652 = vmatprep.subr.bf16.mxu0 %v1561
          %1653 = vmatpush1.bf16.msra.mxu0 %v1560
          %1654 = vmatprep.subr.bf16.mxu0 %v1553
          %1655 = vmatpush1.bf16.msra.mxu0 %v1552
          %1656 = vmatprep.subr.bf16.mxu0 %v1545
          %1657 = vmatpush1.bf16.msra.mxu0 %v1544
          %1658 = vmatprep.subr.bf16.mxu0 %v1537
          %1659 = vmatpush1.bf16.msra.mxu0 %v1536
          %1660 = vmatprep.subr.bf16.mxu0 %v1529
          %1661 = vmatpush1.bf16.msra.mxu0 %v1528
          %1662 = vmatprep.subr.bf16.mxu0 %v1521
          %1663 = vmatpush1.bf16.msra.mxu0 %v1520
          %1664 = vmatprep.subr.bf16.mxu0 0
          %1665 = vmatpush2.bf16.msra.mxu0 0
          %1666 = vmatprep.subr.bf16.mxu0 0
          %1667 = vmatpush2.bf16.msra.mxu0 0
          %1668 = vmatprep.subr.bf16.mxu0 0
          %1669 = vmatpush2.bf16.msra.mxu0 0
          %1670 = vmatprep.subr.bf16.mxu0 0
          %1671 = vmatpush2.bf16.msra.mxu0 0
          %1672 = vmatprep.subr.bf16.mxu0 0
          %1673 = vmatpush2.bf16.msra.mxu0 0
          %1674 = vmatprep.subr.bf16.mxu0 0
          %1675 = vmatpush2.bf16.msra.mxu0 0
          %1676 = vmatprep.subr.bf16.mxu0 0
          %1677 = vmatpush2.bf16.msra.mxu0 0
          %1678 = vmatprep.subr.bf16.mxu0 0
          %1679 = vmatpush2.bf16.msra.mxu0 0
          %1680 = vmatprep.mubr.bf16.mxu0 0
          %1681 = vmatmul.mubr.bf16.gmra.mxu0 %v1221
          %v1682 = vpop.f32.mrf.mxu0
          %v1683 = vadd.f32 %v1291, %v1682
          %v1684 = vpop.f32.mrf.mxu0
          %v1685 = vadd.f32 %v1295, %v1684
          %v1686 = vpop.f32.mrf.mxu0
          %v1687 = vpop.f32.mrf.mxu0
          %1688 = vdwg.mxu0
          %1689 = vmatprep.subr.bf16.mxu0 %v1579
          %1690 = vmatpush1.bf16.msra.mxu0 %v1578
          %1691 = vmatprep.subr.bf16.mxu0 %v1571
          %1692 = vmatpush1.bf16.msra.mxu0 %v1570
          %1693 = vmatprep.subr.bf16.mxu0 %v1563
          %1694 = vmatpush1.bf16.msra.mxu0 %v1562
          %1695 = vmatprep.subr.bf16.mxu0 %v1555
          %1696 = vmatpush1.bf16.msra.mxu0 %v1554
          %1697 = vmatprep.subr.bf16.mxu0 %v1547
          %1698 = vmatpush1.bf16.msra.mxu0 %v1546
          %1699 = vmatprep.subr.bf16.mxu0 %v1539
          %1700 = vmatpush1.bf16.msra.mxu0 %v1538
          %1701 = vmatprep.subr.bf16.mxu0 %v1531
          %1702 = vmatpush1.bf16.msra.mxu0 %v1530
          %1703 = vmatprep.subr.bf16.mxu0 %v1523
          %1704 = vmatpush1.bf16.msra.mxu0 %v1522
          %1705 = vmatprep.subr.bf16.mxu0 0
          %1706 = vmatpush2.bf16.msra.mxu0 0
          %1707 = vmatprep.subr.bf16.mxu0 0
          %1708 = vmatpush2.bf16.msra.mxu0 0
          %1709 = vmatprep.subr.bf16.mxu0 0
          %1710 = vmatpush2.bf16.msra.mxu0 0
          %1711 = vmatprep.subr.bf16.mxu0 0
          %1712 = vmatpush2.bf16.msra.mxu0 0
          %1713 = vmatprep.subr.bf16.mxu0 0
          %1714 = vmatpush2.bf16.msra.mxu0 0
          %1715 = vmatprep.subr.bf16.mxu0 0
          %1716 = vmatpush2.bf16.msra.mxu0 0
          %1717 = vmatprep.subr.bf16.mxu0 0
          %1718 = vmatpush2.bf16.msra.mxu0 0
          %1719 = vmatprep.subr.bf16.mxu0 0
          %1720 = vmatpush2.bf16.msra.mxu0 0
          %1721 = vmatprep.mubr.bf16.mxu0 0
          %1722 = vmatmul.mubr.bf16.gmra.mxu0 %v1221
          %v1723 = vpop.f32.mrf.mxu0
          %v1724 = vadd.f32 %v1299, %v1723
          %v1725 = vpop.f32.mrf.mxu0
          %v1726 = vadd.f32 %v1303, %v1725
          %v1727 = vpop.f32.mrf.mxu0
          %v1728 = vpop.f32.mrf.mxu0
          %1729 = vdwg.mxu0
          %1730 = vmatprep.subr.bf16.mxu0 %v1581
          %1731 = vmatpush1.bf16.msra.mxu0 %v1580
          %1732 = vmatprep.subr.bf16.mxu0 %v1573
          %1733 = vmatpush1.bf16.msra.mxu0 %v1572
          %1734 = vmatprep.subr.bf16.mxu0 %v1565
          %1735 = vmatpush1.bf16.msra.mxu0 %v1564
          %1736 = vmatprep.subr.bf16.mxu0 %v1557
          %1737 = vmatpush1.bf16.msra.mxu0 %v1556
          %1738 = vmatprep.subr.bf16.mxu0 %v1549
          %1739 = vmatpush1.bf16.msra.mxu0 %v1548
          %1740 = vmatprep.subr.bf16.mxu0 %v1541
          %1741 = vmatpush1.bf16.msra.mxu0 %v1540
          %1742 = vmatprep.subr.bf16.mxu0 %v1533
          %1743 = vmatpush1.bf16.msra.mxu0 %v1532
          %1744 = vmatprep.subr.bf16.mxu0 %v1525
          %1745 = vmatpush1.bf16.msra.mxu0 %v1524
          %1746 = vmatprep.subr.bf16.mxu0 0
          %1747 = vmatpush2.bf16.msra.mxu0 0
          %1748 = vmatprep.subr.bf16.mxu0 0
          %1749 = vmatpush2.bf16.msra.mxu0 0
          %1750 = vmatprep.subr.bf16.mxu0 0
          %1751 = vmatpush2.bf16.msra.mxu0 0
          %1752 = vmatprep.subr.bf16.mxu0 0
          %1753 = vmatpush2.bf16.msra.mxu0 0
          %1754 = vmatprep.subr.bf16.mxu0 0
          %1755 = vmatpush2.bf16.msra.mxu0 0
          %1756 = vmatprep.subr.bf16.mxu0 0
          %1757 = vmatpush2.bf16.msra.mxu0 0
          %1758 = vmatprep.subr.bf16.mxu0 0
          %1759 = vmatpush2.bf16.msra.mxu0 0
          %1760 = vmatprep.subr.bf16.mxu0 0
          %1761 = vmatpush2.bf16.msra.mxu0 0
          %1762 = vmatprep.mubr.bf16.mxu0 0
          %1763 = vmatmul.mubr.bf16.gmra.mxu0 %v1221
          %v1764 = vpop.f32.mrf.mxu0
          %v1765 = vadd.f32 %v1307, %v1764
          %v1766 = vpop.f32.mrf.mxu0
          %v1767 = vadd.f32 %v1311, %v1766
          %v1768 = vpop.f32.mrf.mxu0
          %v1769 = vpop.f32.mrf.mxu0
          %1770 = vdwg.mxu0
          %1771 = vmatprep.subr.bf16.mxu0 %v1583
          %1772 = vmatpush1.bf16.msra.mxu0 %v1582
          %1773 = vmatprep.subr.bf16.mxu0 %v1575
          %1774 = vmatpush1.bf16.msra.mxu0 %v1574
          %1775 = vmatprep.subr.bf16.mxu0 %v1567
          %1776 = vmatpush1.bf16.msra.mxu0 %v1566
          %1777 = vmatprep.subr.bf16.mxu0 %v1559
          %1778 = vmatpush1.bf16.msra.mxu0 %v1558
          %1779 = vmatprep.subr.bf16.mxu0 %v1551
          %1780 = vmatpush1.bf16.msra.mxu0 %v1550
          %1781 = vmatprep.subr.bf16.mxu0 %v1543
          %1782 = vmatpush1.bf16.msra.mxu0 %v1542
          %1783 = vmatprep.subr.bf16.mxu0 %v1535
          %1784 = vmatpush1.bf16.msra.mxu0 %v1534
          %1785 = vmatprep.subr.bf16.mxu0 %v1527
          %1786 = vmatpush1.bf16.msra.mxu0 %v1526
          %1787 = vmatprep.subr.bf16.mxu0 0
          %1788 = vmatpush2.bf16.msra.mxu0 0
          %1789 = vmatprep.subr.bf16.mxu0 0
          %1790 = vmatpush2.bf16.msra.mxu0 0
          %1791 = vmatprep.subr.bf16.mxu0 0
          %1792 = vmatpush2.bf16.msra.mxu0 0
          %1793 = vmatprep.subr.bf16.mxu0 0
          %1794 = vmatpush2.bf16.msra.mxu0 0
          %1795 = vmatprep.subr.bf16.mxu0 0
          %1796 = vmatpush2.bf16.msra.mxu0 0
          %1797 = vmatprep.subr.bf16.mxu0 0
          %1798 = vmatpush2.bf16.msra.mxu0 0
          %1799 = vmatprep.subr.bf16.mxu0 0
          %1800 = vmatpush2.bf16.msra.mxu0 0
          %1801 = vmatprep.subr.bf16.mxu0 0
          %1802 = vmatpush2.bf16.msra.mxu0 0
          %1803 = vmatprep.mubr.bf16.mxu0 0
          %1804 = vmatmul.mubr.bf16.gmra.mxu0 %v1221
          %v1805 = vpop.f32.mrf.mxu0
          %v1806 = vadd.f32 %v1315, %v1805
          %v1807 = vpop.f32.mrf.mxu0
          %v1808 = vadd.f32 %v1319, %v1807
          %v1809 = vpop.f32.mrf.mxu0
          %v1810 = vpop.f32.mrf.mxu0
          %1811 = vdwg.mxu0
          %1812 = vst [vmem:[%s491] sm:$0xff] %v1683
          %1813 = vst [vmem:[%s491 + $0x8] sm:$0xff] %v1685
          %1814 = vst [vmem:[%s491 + $0x10] sm:$0xff] %v1724
          %1815 = vst [vmem:[%s491 + $0x18] sm:$0xff] %v1726
          %1816 = vst [vmem:[%s491 + $0x20] sm:$0xff] %v1765
          %1817 = vst [vmem:[%s491 + $0x28] sm:$0xff] %v1767
          %1818 = vst [vmem:[%s491 + $0x30] sm:$0xff] %v1806
          %1819 = vst [vmem:[%s491 + $0x38] sm:$0xff] %v1808
        $region72: #{generator_forward.1} parent=47 // pred_fallthru
          _
        %s1820 = smul.u32 %s33, %s32
        %s1821 = smul.u32 8, %s1820
        %p1822 = scmp.lt.s32.totalorder %s1821, 7
        %s1823 = scalar_select %p1822, %s1821, 7
        %s1824 = smul.addr %s1823, 8
        %s1825 = scalar_lea.vmem %s9, %s1824
        // Predicated region
        $region73: #{generator_forward.1} parent=47 // pred_check
          %p1826 = pneg %p236
        $region74: #{generator_forward.1} parent=47 // pred_check_branch
          %1828 = sbr.rel (%p1826) target = $region76
        $region75: #{generator_forward.1} parent=47 // pred_region
          _
        $region76: #{generator_forward.1} parent=47 // pred_fallthru
          _
        // Predicated region
        $region77: #{generator_forward.1} parent=47 // pred_check
          %p1829 = pneg %p257
        $region78: #{generator_forward.1} parent=47 // pred_check_branch
          %1831 = sbr.rel (%p1829) target = $region80
        $region79: #{generator_forward.1} parent=47 // pred_region
          _
        $region80: #{generator_forward.1} parent=47 // pred_fallthru
          _
        // Predicated region
        $region81: #{generator_forward.1} parent=47 // pred_check
          %p1832 = pneg %p285
        $region82: #{generator_forward.1} parent=47 // pred_check_branch
          %1834 = sbr.rel (%p1832) target = $region84
        $region83: #{generator_forward.1} parent=47 // pred_region
          %s1835 = smul.u32 %s33, %s32
          %s1836 = smul.u32 8, %s1835
        $region84: #{generator_forward.1} parent=47 // pred_fallthru
          _
        // Predicated region
        $region85: #{generator_forward.1} parent=47 // pred_check
          %p1837 = pneg %p236
        $region86: #{generator_forward.1} parent=47 // pred_check_branch
          %1839 = sbr.rel (%p1837) target = $region88
        $region87: #{generator_forward.1} parent=47 // pred_region
          _
        $region88: #{generator_forward.1} parent=47 // pred_fallthru
          _
        // Predicated region
        $region89: #{generator_forward.1} parent=47 // pred_check
          %p1840 = pneg %p257
        $region90: #{generator_forward.1} parent=47 // pred_check_branch
          %1842 = sbr.rel (%p1840) target = $region92
        $region91: #{generator_forward.1} parent=47 // pred_region
          _
        $region92: #{generator_forward.1} parent=47 // pred_fallthru
          _
      $region48: #{generator_forward.1} parent=5 // pred_fallthru
        _
      %p1843 = scmp.le.s32.totalorder 2, %s23
      // Predicated region
      $region93: #{generator_forward.1} parent=5 // pred_check
        %p1844 = pneg %p1843
      $region94: #{generator_forward.1} parent=5 // pred_check_branch
        %1846 = sbr.rel (%p1844) target = $region96
      $region95: #{generator_forward.1} parent=5 // pred_region
        %s1847 = ssub.s32 %s23, 2
        // Predicated region
        $region97: #{generator_forward.1} parent=95 // pred_check
          %p1848 = pneg %p291
        $region98: #{generator_forward.1} parent=95 // pred_check_branch
          %1850 = sbr.rel (%p1848) target = $region100
        $region99: #{generator_forward.1} parent=95 // pred_region
          %s1851 = smul.u32 %s35, %s34
          %s1852 = smul.u32 8, %s1851
          %p1853 = scmp.lt.s32.totalorder %s1852, 7
          %s1854 = scalar_select %p1853, %s1852, 7
          %s1855 = smul.addr %s1854, 8
          %s1856 = scalar_lea.vmem %s9, %s1855
        $region100: #{generator_forward.1} parent=95 // pred_fallthru
          _
      $region96: #{generator_forward.1} parent=5 // pred_fallthru
        _
    $region6: #{generator_forward.1} parent=1 // loop_footer
      %s27 = sadd.s32 1, %s23
    $region7: #{generator_forward.1} parent=1 // loop_footer_branch
      %22 = sbr.rel target = $region3
    $region8: #{generator_forward.1} parent=1 // loop_exit
      _
    %1857 = vsyncpa [#allocation5], 1
    %s1858 = scalar_lea.sflag [#allocation5], 1
    %1859 = vsyncpa %s1858, 1
    %1860 = vsyncpa [#allocation7], 1
    %s1861 = scalar_lea.sflag [#allocation7], 1
    %1862 = vsyncpa %s1861, 1

</llo_original>
